<compile_context>
chip_gen: v7x
topology: tpu7x:2x2x1
jax: 0.10.0
libtpu: 0.0.40
codegen_flags: <defaults>
</compile_context>

<pallas_src>
import functools

import jax
import jax.numpy as jnp
from jax.experimental import pallas as pl
from jax.experimental.pallas import tpu as pltpu

BN_EPS = 1e-5
NORM_EPS = 1e-12           # torch.nn.functional.normalize default eps
NORM_EPS_SQ = NORM_EPS * NORM_EPS


def _latent_predict_head_kernel(x_ref, tgt_ref, w1_ref, b1_ref,
                                gamma_ref, beta_ref, w2_ref, b2_ref,
                                loss_ref,
                                sum_ref, sumsq_ref, scale_ref, shift_ref,
                                loss_acc_ref, *opt_scratch,
                                total_n: int, cache_h: bool):
    h_cache_ref = opt_scratch[0] if cache_h else None
    p = pl.program_id(0)            # 0 = BN-stats pass, 1 = compute/loss pass
    i = pl.program_id(1)            # batch tile index
    n_tiles = pl.num_programs(1)
    inv_n = 1.0 / float(total_n)    # static constant -> multiply, never divide

    def fc1():
        # bf16 operands on the MXU, f32 accumulation.
        xb = x_ref[...].astype(jnp.bfloat16)
        return jnp.dot(xb, w1_ref[...],
                       preferred_element_type=jnp.float32) + b1_ref[...]

    @pl.when(p == 0)
    def _stats_pass():
        h = fc1()                                            # (tile_n, H) f32

        @pl.when(i == 0)
        def _init():
            sum_ref[...] = jnp.zeros_like(sum_ref)
            sumsq_ref[...] = jnp.zeros_like(sumsq_ref)

        # E[h^2] - E[h]^2 in f32; fine for BYOL-scale (near-zero-mean) activations.
        sum_ref[...] += jnp.sum(h, axis=0, keepdims=True)
        sumsq_ref[...] += jnp.sum(h * h, axis=0, keepdims=True)

        if cache_h:
            h_cache_ref[i] = h.astype(jnp.bfloat16)

    @pl.when(p == 1)
    def _compute_pass():
        @pl.when(i == 0)
        def _finalize_stats():
            mean = sum_ref[...] * inv_n
            var = sumsq_ref[...] * inv_n - mean * mean       # biased var (BN train mode)
            scale = gamma_ref[...] * jax.lax.rsqrt(var + BN_EPS)
            scale_ref[...] = scale
            shift_ref[...] = beta_ref[...] - mean * scale
            loss_acc_ref[...] = jnp.zeros_like(loss_acc_ref)

        if cache_h:
            h = h_cache_ref[i].astype(jnp.float32)           # reuse cached fc1
        else:
            h = fc1()                                        # recompute (large-N path)

        # folded BN (one FMA) + ReLU
        hb = jnp.maximum(h * scale_ref[...] + shift_ref[...], 0.0)

        # fc2: bf16 operands, f32 accumulation
        pred = jnp.dot(hb.astype(jnp.bfloat16), w2_ref[...],
                       preferred_element_type=jnp.float32) + b2_ref[...]

        tgt = tgt_ref[...].astype(jnp.float32)

        # cosine without forming the normalized vectors:
        #   cos = <p,t> * rsqrt(max(|p|^2, eps^2)) * rsqrt(max(|t|^2, eps^2))
        dot_pt = jnp.sum(pred * tgt, axis=1, keepdims=True)
        p_sq = jnp.sum(pred * pred, axis=1, keepdims=True)
        t_sq = jnp.sum(tgt * tgt, axis=1, keepdims=True)
        cos = (dot_pt
               * jax.lax.rsqrt(jnp.maximum(p_sq, NORM_EPS_SQ))
               * jax.lax.rsqrt(jnp.maximum(t_sq, NORM_EPS_SQ)))
        loss_acc_ref[...] = loss_acc_ref[...] + jnp.sum(cos)

        @pl.when(i == n_tiles - 1)
        def _write_loss():
            loss_ref[...] = 2.0 * (1.0 - loss_acc_ref[...] * inv_n)


def latent_predict_head(x, target, params, *, tile_n=None, cache_h=None):
    """Returns dict(loss=scalar), matching LatentPredictHead.forward."""
    N, C = x.shape
    H = params["w1"].shape[1]

    # ---- generation-aware VMEM budget -------------------------------------
    try:
        vmem_cap = int(pltpu.get_tpu_info().vmem_capacity_bytes)
    except Exception:
        vmem_cap = 64 * 2**20          # conservative (v7x-sized) fallback

    if tile_n is None:
        tile_n = min(N, 1024 if vmem_cap >= (100 << 20) else 256)
    assert N % tile_n == 0, "batch must be divisible by tile_n"
    assert tile_n % 16 == 0, "bf16 sublane packing: tile_n must be a multiple of 16"
    assert C % 128 == 0 and H % 128 == 0, "keep channel dims lane-dense (128-aligned)"
    n_tiles = N // tile_n

    # ---- weight residency gate ---------------------------------------------
    # Worst case: bf16 w1+w2, double-buffered by the pipeline.
    weight_bytes_worst = 4 * (C * H + H * C)
    if weight_bytes_worst > vmem_cap - (16 << 20):
        # TODO(synk): add a K/H tiling grid axis for fc1/fc2 instead of erroring.
        raise ValueError("w1/w2 too large to stay VMEM-resident on this TPU generation")

    # ---- VMEM estimate / h-cache gate --------------------------------------
    x_item = jnp.dtype(x.dtype).itemsize
    stream_bytes = 2 * 2 * tile_n * C * x_item          # x + target, double-buffered
    interm_bytes = 6 * tile_n * max(H, C) * 4           # f32 h/hb/pred/etc.
    small_bytes = 16 * max(H, C) * 4 + (1 << 16)        # biases/BN/scratch vectors
    cache_bytes = N * H * 2                             # bf16 h cache
    if cache_h is None:
        cache_h = (weight_bytes_worst + stream_bytes + interm_bytes + small_bytes
                   + cache_bytes + (8 << 20)) <= vmem_cap
    est = (weight_bytes_worst + stream_bytes + interm_bytes + small_bytes
           + (cache_bytes if cache_h else 0))
    vmem_limit = int(min(vmem_cap - (2 << 20), max(32 << 20, est + (8 << 20))))

    # ---- one-time bf16 cast of the weights (biases/BN stay f32) ------------
    w1 = params["w1"].astype(jnp.bfloat16)
    w2 = params["w2"].astype(jnp.bfloat16)
    b1 = params["b1"].astype(jnp.float32)
    gamma = params["gamma"].astype(jnp.float32)
    beta = params["beta"].astype(jnp.float32)
    b2 = params["b2"].astype(jnp.float32)

    kernel = functools.partial(_latent_predict_head_kernel,
                               total_n=N, cache_h=cache_h)

    # x is only needed in pass 0 when the h-cache is on; target only in pass 1.
    if cache_h:
        x_map = lambda p, i: (i * (1 - p), 0)
    else:
        x_map = lambda p, i: (i, 0)
    tgt_map = lambda p, i: (i * p, 0)

    scratch_shapes = [
        pltpu.VMEM((1, H), jnp.float32),    # per-channel sum of h
        pltpu.VMEM((1, H), jnp.float32),    # per-channel sum of h^2
        pltpu.VMEM((1, H), jnp.float32),    # folded BN scale
        pltpu.VMEM((1, H), jnp.float32),    # folded BN shift
        pltpu.VMEM((1, 1), jnp.float32),    # cosine-sum accumulator
    ]
    if cache_h:
        scratch_shapes.append(pltpu.VMEM((n_tiles, tile_n, H), jnp.bfloat16))

    def build(single_buffer_weights):
        wkw = dict(pipeline_mode=pl.Buffered(1)) if single_buffer_weights else {}
        in_specs = [
            pl.BlockSpec((tile_n, C), x_map),                        # x      (streamed)
            pl.BlockSpec((tile_n, C), tgt_map),                      # target (streamed)
            pl.BlockSpec((C, H), lambda p, i: (0, 0), **wkw),        # w1     (resident)
            pl.BlockSpec((1, H), lambda p, i: (0, 0)),               # b1
            pl.BlockSpec((1, H), lambda p, i: (0, 0)),               # gamma
            pl.BlockSpec((1, H), lambda p, i: (0, 0)),               # beta
            pl.BlockSpec((H, C), lambda p, i: (0, 0), **wkw),        # w2     (resident)
            pl.BlockSpec((1, C), lambda p, i: (0, 0)),               # b2
        ]
        grid_spec = pltpu.PrefetchScalarGridSpec(
            num_scalar_prefetch=0,
            grid=(2, n_tiles),
            in_specs=in_specs,
            out_specs=pl.BlockSpec((1, 1), lambda p, i: (0, 0)),
            scratch_shapes=scratch_shapes,
        )
        return pl.pallas_call(
            kernel,
            out_shape=jax.ShapeDtypeStruct((1, 1), jnp.float32),
            grid_spec=grid_spec,
            compiler_params=pltpu.CompilerParams(
                # Both grid axes reduce into shared scratch -> sequential.
                dimension_semantics=("arbitrary", "arbitrary"),
                vmem_limit_bytes=vmem_limit,
            ),
        )

    args = (x, target, w1, b1, gamma, beta, w2, b2)
    try:
        loss = build(True)(*args)        # single-buffered resident weights
    except Exception:
        loss = build(False)(*args)       # fallback: default (double) buffering
    return {"loss": loss[0, 0]}


def init_params(key, in_channels, hid_channels, out_channels):
    """init_weights(init_linear='normal'): W ~ N(0, 0.01), biases 0, BN gamma=1, beta=0."""
    k1, k2 = jax.random.split(key)
    w1 = 0.01 * jax.random.normal(k1, (in_channels, hid_channels), jnp.float32)
    b1 = jnp.zeros((1, hid_channels), jnp.float32)
    gamma = jnp.ones((1, hid_channels), jnp.float32)
    beta = jnp.zeros((1, hid_channels), jnp.float32)
    w2 = 0.01 * jax.random.normal(k2, (hid_channels, out_channels), jnp.float32)
    b2 = jnp.zeros((1, out_channels), jnp.float32)
    return dict(w1=w1, b1=b1, gamma=gamma, beta=beta, w2=w2, b2=b2)


def reference_f32(x, target, p):
    """Pure-f32 JAX reference of the module forward (loose sanity check)."""
    h = x @ p["w1"] + p["b1"]
    mean = h.mean(axis=0, keepdims=True)
    var = ((h - mean) ** 2).mean(axis=0, keepdims=True)
    h = (h - mean) / jnp.sqrt(var + BN_EPS) * p["gamma"] + p["beta"]
    h = jnp.maximum(h, 0.0)
    pred = h @ p["w2"] + p["b2"]
    pn = pred / jnp.maximum(jnp.linalg.norm(pred, axis=1, keepdims=True), NORM_EPS)
    tn = target / jnp.maximum(jnp.linalg.norm(target, axis=1, keepdims=True), NORM_EPS)
    return 2.0 * (1.0 - (pn * tn).sum(axis=1).mean())


def reference_bf16(x, target, p, *, cache_h=True):
    """JAX reference mirroring the kernel's bf16 matmul / bf16 h-cache numerics."""
    w1 = p["w1"].astype(jnp.bfloat16)
    w2 = p["w2"].astype(jnp.bfloat16)
    h = jnp.dot(x.astype(jnp.bfloat16), w1,
                preferred_element_type=jnp.float32) + p["b1"]
    mean = h.mean(axis=0, keepdims=True)
    var = (h * h).mean(axis=0, keepdims=True) - mean * mean
    scale = p["gamma"] * jax.lax.rsqrt(var + BN_EPS)
    shift = p["beta"] - mean * scale
    h_used = h.astype(jnp.bfloat16).astype(jnp.float32) if cache_h else h
    hb = jnp.maximum(h_used * scale + shift, 0.0)
    pred = jnp.dot(hb.astype(jnp.bfloat16), w2,
                   preferred_element_type=jnp.float32) + p["b2"]
    tgt = target.astype(jnp.float32)
    dot_pt = jnp.sum(pred * tgt, axis=1, keepdims=True)
    p_sq = jnp.sum(pred * pred, axis=1, keepdims=True)
    t_sq = jnp.sum(tgt * tgt, axis=1, keepdims=True)
    cos = (dot_pt
           * jax.lax.rsqrt(jnp.maximum(p_sq, NORM_EPS_SQ))
           * jax.lax.rsqrt(jnp.maximum(t_sq, NORM_EPS_SQ)))
    return 2.0 * (1.0 - cos.mean())


if __name__ == "__main__":
    # Small but lane-dense shapes: tile_n multiple of 16 (bf16), C/H multiples of 128.
    N, C, H = 64, 128, 256

    key = jax.random.PRNGKey(0)
    kx, kt, kp, kg, kb = jax.random.split(key, 5)
    x = jax.random.normal(kx, (N, C), jnp.float32)
    target = jax.random.normal(kt, (N, C), jnp.float32)
    params = init_params(kp, C, H, C)
    # perturb the BN affine so the folded scale/shift path is actually exercised
    params["gamma"] = params["gamma"] + 0.1 * jax.random.normal(kg, (1, H), jnp.float32)
    params["beta"] = params["beta"] + 0.1 * jax.random.normal(kb, (1, H), jnp.float32)

    out = latent_predict_head(x, target, params, tile_n=32, cache_h=True)
    loss = jax.block_until_ready(out["loss"])

    ref_bf16 = reference_bf16(x, target, params, cache_h=True)
    ref_f32 = reference_f32(x, target, params)
    assert jnp.allclose(loss, ref_bf16, atol=2e-3, rtol=2e-3), (loss, ref_bf16)
    assert jnp.allclose(loss, ref_f32, atol=5e-2, rtol=5e-2), (loss, ref_f32)
    print("KERNEL_OK")
</pallas_src>

<mosaic_0001>
module attributes {stable_mosaic.version = 11 : i64} {
  func.func @_latent_predict_head_kernel(%arg0: i32, %arg1: i32, %arg2: memref<32x128xf32, #tpu.memory_space<vmem>>, %arg3: memref<32x128xf32, #tpu.memory_space<vmem>>, %arg4: memref<128x256xbf16, #tpu.memory_space<vmem>>, %arg5: memref<1x256xf32, #tpu.memory_space<vmem>>, %arg6: memref<1x256xf32, #tpu.memory_space<vmem>>, %arg7: memref<1x256xf32, #tpu.memory_space<vmem>>, %arg8: memref<256x128xbf16, #tpu.memory_space<vmem>>, %arg9: memref<1x128xf32, #tpu.memory_space<vmem>>, %arg10: memref<1x1xf32, #tpu.memory_space<vmem>>, %arg11: memref<1x256xf32, #tpu.memory_space<vmem>>, %arg12: memref<1x256xf32, #tpu.memory_space<vmem>>, %arg13: memref<1x256xf32, #tpu.memory_space<vmem>>, %arg14: memref<1x256xf32, #tpu.memory_space<vmem>>, %arg15: memref<1x1xf32, #tpu.memory_space<vmem>>, %arg16: memref<2x32x256xbf16, #tpu.memory_space<vmem>>) attributes {dimension_semantics = [#tpu.dimension_semantics<arbitrary>, #tpu.dimension_semantics<arbitrary>], iteration_bounds = array<i64: 2, 2>, scalar_prefetch = 0 : i64, scratch_operands = 6 : i64, tpu.core_type = #tpu.core_type<tc>, window_params = [{transform_indices = @transform_0, window_bounds = array<i64: 32, 128>}, {transform_indices = @transform_1, window_bounds = array<i64: 32, 128>}, {pipeline_mode = #tpu.pipeline_mode<synchronous>, transform_indices = @transform_2, window_bounds = array<i64: 128, 256>}, {pipeline_mode = #tpu.pipeline_mode<synchronous>, transform_indices = @transform_3, window_bounds = array<i64: 1, 256>}, {pipeline_mode = #tpu.pipeline_mode<synchronous>, transform_indices = @transform_4, window_bounds = array<i64: 1, 256>}, {pipeline_mode = #tpu.pipeline_mode<synchronous>, transform_indices = @transform_5, window_bounds = array<i64: 1, 256>}, {pipeline_mode = #tpu.pipeline_mode<synchronous>, transform_indices = @transform_6, window_bounds = array<i64: 256, 128>}, {pipeline_mode = #tpu.pipeline_mode<synchronous>, transform_indices = @transform_7, window_bounds = array<i64: 1, 128>}, {pipeline_mode = #tpu.pipeline_mode<synchronous>, transform_indices = @transform_8, window_bounds = array<i64: 1, 1>}]} {
    %c0_i32 = arith.constant 0 : i32
    %0 = arith.cmpi eq, %arg0, %c0_i32 : i32
    %1 = arith.extui %0 : i1 to i32
    %c0_i32_0 = arith.constant 0 : i32
    %2 = arith.cmpi ne, %1, %c0_i32_0 : i32
    scf.if %2 {
      %c0 = arith.constant 0 : index
      %c0_2 = arith.constant 0 : index
      %6 = vector.load %arg2[%c0, %c0_2] : memref<32x128xf32, #tpu.memory_space<vmem>>, vector<32x128xf32>
      %7 = arith.truncf %6 : vector<32x128xf32> to vector<32x128xbf16>
      %c0_3 = arith.constant 0 : index
      %c0_4 = arith.constant 0 : index
      %8 = vector.load %arg4[%c0_3, %c0_4] : memref<128x256xbf16, #tpu.memory_space<vmem>>, vector<128x256xbf16>
      %cst = arith.constant dense<0.000000e+00> : vector<32x256xf32>
      %9 = tpu.matmul %7, %8, %cst {dimension_numbers = #tpu.dot_dimension_numbers<[1], [0], [0], [1], [0, 0, 1, 1], [], []>} : vector<32x128xbf16>, vector<128x256xbf16>, vector<32x256xf32> -> vector<32x256xf32>
      %c0_5 = arith.constant 0 : index
      %c0_6 = arith.constant 0 : index
      %10 = vector.load %arg5[%c0_5, %c0_6] : memref<1x256xf32, #tpu.memory_space<vmem>>, vector<1x256xf32>
      %11 = vector.broadcast %10 : vector<1x256xf32> to vector<32x256xf32>
      %12 = arith.addf %9, %11 : vector<32x256xf32>
      %c0_i32_7 = arith.constant 0 : i32
      %13 = arith.cmpi eq, %arg1, %c0_i32_7 : i32
      %14 = arith.extui %13 : i1 to i32
      %c0_i32_8 = arith.constant 0 : i32
      %15 = arith.cmpi ne, %14, %c0_i32_8 : i32
      scf.if %15 {
        %cst_21 = arith.constant 0.000000e+00 : f32
        %32 = vector.broadcast %cst_21 : f32 to vector<1x256xf32>
        %c0_22 = arith.constant 0 : index
        %c0_23 = arith.constant 0 : index
        %33 = vector.load %arg11[%c0_22, %c0_23] : memref<1x256xf32, #tpu.memory_space<vmem>>, vector<1x256xf32>
        tpu.vector_store %arg11[%c0_22, %c0_23], %32 {strides = array<i32>} : memref<1x256xf32, #tpu.memory_space<vmem>>, vector<1x256xf32>,
        %cst_24 = arith.constant 0.000000e+00 : f32
        %34 = vector.broadcast %cst_24 : f32 to vector<1x256xf32>
        %c0_25 = arith.constant 0 : index
        %c0_26 = arith.constant 0 : index
        %35 = vector.load %arg12[%c0_25, %c0_26] : memref<1x256xf32, #tpu.memory_space<vmem>>, vector<1x256xf32>
        tpu.vector_store %arg12[%c0_25, %c0_26], %34 {strides = array<i32>} : memref<1x256xf32, #tpu.memory_space<vmem>>, vector<1x256xf32>,
      } else {
      }
      %c0_9 = arith.constant 0 : index
      %c0_10 = arith.constant 0 : index
      %16 = vector.load %arg11[%c0_9, %c0_10] : memref<1x256xf32, #tpu.memory_space<vmem>>, vector<1x256xf32>
      %cst_11 = arith.constant dense<0.000000e+00> : vector<256xf32>
      %17 = vector.multi_reduction <add>, %12, %cst_11 [0] : vector<32x256xf32> to vector<256xf32>
      %18 = vector.shape_cast %17 : vector<256xf32> to vector<1x256xf32>
      %19 = arith.addf %16, %18 : vector<1x256xf32>
      %c0_12 = arith.constant 0 : index
      %c0_13 = arith.constant 0 : index
      %20 = vector.load %arg11[%c0_12, %c0_13] : memref<1x256xf32, #tpu.memory_space<vmem>>, vector<1x256xf32>
      tpu.vector_store %arg11[%c0_12, %c0_13], %19 {strides = array<i32>} : memref<1x256xf32, #tpu.memory_space<vmem>>, vector<1x256xf32>,
      %c0_14 = arith.constant 0 : index
      %c0_15 = arith.constant 0 : index
      %21 = vector.load %arg12[%c0_14, %c0_15] : memref<1x256xf32, #tpu.memory_space<vmem>>, vector<1x256xf32>
      %22 = arith.mulf %12, %12 : vector<32x256xf32>
      %cst_16 = arith.constant dense<0.000000e+00> : vector<256xf32>
      %23 = vector.multi_reduction <add>, %22, %cst_16 [0] : vector<32x256xf32> to vector<256xf32>
      %24 = vector.shape_cast %23 : vector<256xf32> to vector<1x256xf32>
      %25 = arith.addf %21, %24 : vector<1x256xf32>
      %c0_17 = arith.constant 0 : index
      %c0_18 = arith.constant 0 : index
      %26 = vector.load %arg12[%c0_17, %c0_18] : memref<1x256xf32, #tpu.memory_space<vmem>>, vector<1x256xf32>
      tpu.vector_store %arg12[%c0_17, %c0_18], %25 {strides = array<i32>} : memref<1x256xf32, #tpu.memory_space<vmem>>, vector<1x256xf32>,
      %27 = arith.truncf %12 : vector<32x256xf32> to vector<32x256xbf16>
      %28 = arith.index_cast %arg1 : i32 to index
      %c0_19 = arith.constant 0 : index
      %c0_20 = arith.constant 0 : index
      %29 = vector.load %arg16[%28, %c0_19, %c0_20] : memref<2x32x256xbf16, #tpu.memory_space<vmem>>, vector<1x32x256xbf16>
      %30 = vector.shape_cast %29 : vector<1x32x256xbf16> to vector<32x256xbf16>
      %31 = vector.shape_cast %27 : vector<32x256xbf16> to vector<1x32x256xbf16>
      tpu.vector_store %arg16[%28, %c0_19, %c0_20], %31 {strides = array<i32>} : memref<2x32x256xbf16, #tpu.memory_space<vmem>>, vector<1x32x256xbf16>,
    } else {
    }
    %c1_i32 = arith.constant 1 : i32
    %3 = arith.cmpi eq, %arg0, %c1_i32 : i32
    %4 = arith.extui %3 : i1 to i32
    %c0_i32_1 = arith.constant 0 : i32
    %5 = arith.cmpi ne, %4, %c0_i32_1 : i32
    scf.if %5 {
      %c0_i32_2 = arith.constant 0 : i32
      %6 = arith.cmpi eq, %arg1, %c0_i32_2 : i32
      %7 = arith.extui %6 : i1 to i32
      %c0_i32_3 = arith.constant 0 : i32
      %8 = arith.cmpi ne, %7, %c0_i32_3 : i32
      scf.if %8 {
        %c0_28 = arith.constant 0 : index
        %c0_29 = arith.constant 0 : index
        %56 = vector.load %arg11[%c0_28, %c0_29] : memref<1x256xf32, #tpu.memory_space<vmem>>, vector<1x256xf32>
        %cst_30 = arith.constant 1.562500e-02 : f32
        %57 = vector.broadcast %cst_30 : f32 to vector<1x256xf32>
        %58 = arith.mulf %56, %57 : vector<1x256xf32>
        %c0_31 = arith.constant 0 : index
        %c0_32 = arith.constant 0 : index
        %59 = vector.load %arg12[%c0_31, %c0_32] : memref<1x256xf32, #tpu.memory_space<vmem>>, vector<1x256xf32>
        %cst_33 = arith.constant 1.562500e-02 : f32
        %60 = vector.broadcast %cst_33 : f32 to vector<1x256xf32>
        %61 = arith.mulf %59, %60 : vector<1x256xf32>
        %62 = arith.mulf %58, %58 : vector<1x256xf32>
        %63 = arith.subf %61, %62 : vector<1x256xf32>
        %c0_34 = arith.constant 0 : index
        %c0_35 = arith.constant 0 : index
        %64 = vector.load %arg6[%c0_34, %c0_35] : memref<1x256xf32, #tpu.memory_space<vmem>>, vector<1x256xf32>
        %cst_36 = arith.constant 9.99999974E-6 : f32
        %65 = vector.broadcast %cst_36 : f32 to vector<1x256xf32>
        %66 = arith.addf %63, %65 : vector<1x256xf32>
        %67 = math.rsqrt %66 : vector<1x256xf32>
        %68 = arith.mulf %64, %67 : vector<1x256xf32>
        %c0_37 = arith.constant 0 : index
        %c0_38 = arith.constant 0 : index
        %69 = vector.load %arg13[%c0_37, %c0_38] : memref<1x256xf32, #tpu.memory_space<vmem>>, vector<1x256xf32>
        tpu.vector_store %arg13[%c0_37, %c0_38], %68 {strides = array<i32>} : memref<1x256xf32, #tpu.memory_space<vmem>>, vector<1x256xf32>,
        %c0_39 = arith.constant 0 : index
        %c0_40 = arith.constant 0 : index
        %70 = vector.load %arg7[%c0_39, %c0_40] : memref<1x256xf32, #tpu.memory_space<vmem>>, vector<1x256xf32>
        %71 = arith.mulf %58, %68 : vector<1x256xf32>
        %72 = arith.subf %70, %71 : vector<1x256xf32>
        %c0_41 = arith.constant 0 : index
        %c0_42 = arith.constant 0 : index
        %73 = vector.load %arg14[%c0_41, %c0_42] : memref<1x256xf32, #tpu.memory_space<vmem>>, vector<1x256xf32>
        tpu.vector_store %arg14[%c0_41, %c0_42], %72 {strides = array<i32>} : memref<1x256xf32, #tpu.memory_space<vmem>>, vector<1x256xf32>,
        %cst_43 = arith.constant 0.000000e+00 : f32
        %74 = vector.broadcast %cst_43 : f32 to vector<1x1xf32>
        %c0_44 = arith.constant 0 : index
        %c0_45 = arith.constant 0 : index
        %75 = vector.load %arg15[%c0_44, %c0_45] : memref<1x1xf32, #tpu.memory_space<vmem>>, vector<1x1xf32>
        tpu.vector_store %arg15[%c0_44, %c0_45], %74 {strides = array<i32>} : memref<1x1xf32, #tpu.memory_space<vmem>>, vector<1x1xf32>,
      } else {
      }
      %9 = arith.index_cast %arg1 : i32 to index
      %c0 = arith.constant 0 : index
      %c0_4 = arith.constant 0 : index
      %10 = vector.load %arg16[%9, %c0, %c0_4] : memref<2x32x256xbf16, #tpu.memory_space<vmem>>, vector<1x32x256xbf16>
      %11 = vector.shape_cast %10 : vector<1x32x256xbf16> to vector<32x256xbf16>
      %12 = arith.extf %11 : vector<32x256xbf16> to vector<32x256xf32>
      %c0_5 = arith.constant 0 : index
      %c0_6 = arith.constant 0 : index
      %13 = vector.load %arg13[%c0_5, %c0_6] : memref<1x256xf32, #tpu.memory_space<vmem>>, vector<1x256xf32>
      %14 = vector.broadcast %13 : vector<1x256xf32> to vector<32x256xf32>
      %15 = arith.mulf %12, %14 : vector<32x256xf32>
      %c0_7 = arith.constant 0 : index
      %c0_8 = arith.constant 0 : index
      %16 = vector.load %arg14[%c0_7, %c0_8] : memref<1x256xf32, #tpu.memory_space<vmem>>, vector<1x256xf32>
      %17 = vector.broadcast %16 : vector<1x256xf32> to vector<32x256xf32>
      %18 = arith.addf %15, %17 : vector<32x256xf32>
      %cst = arith.constant 0.000000e+00 : f32
      %19 = vector.broadcast %cst : f32 to vector<32x256xf32>
      %20 = arith.maximumf %18, %19 : vector<32x256xf32>
      %21 = arith.truncf %20 : vector<32x256xf32> to vector<32x256xbf16>
      %c0_9 = arith.constant 0 : index
      %c0_10 = arith.constant 0 : index
      %22 = vector.load %arg8[%c0_9, %c0_10] : memref<256x128xbf16, #tpu.memory_space<vmem>>, vector<256x128xbf16>
      %cst_11 = arith.constant dense<0.000000e+00> : vector<32x128xf32>
      %23 = tpu.matmul %21, %22, %cst_11 {dimension_numbers = #tpu.dot_dimension_numbers<[1], [0], [0], [1], [0, 0, 1, 1], [], []>} : vector<32x256xbf16>, vector<256x128xbf16>, vector<32x128xf32> -> vector<32x128xf32>
      %c0_12 = arith.constant 0 : index
      %c0_13 = arith.constant 0 : index
      %24 = vector.load %arg9[%c0_12, %c0_13] : memref<1x128xf32, #tpu.memory_space<vmem>>, vector<1x128xf32>
      %25 = vector.broadcast %24 : vector<1x128xf32> to vector<32x128xf32>
      %26 = arith.addf %23, %25 : vector<32x128xf32>
      %c0_14 = arith.constant 0 : index
      %c0_15 = arith.constant 0 : index
      %27 = vector.load %arg3[%c0_14, %c0_15] : memref<32x128xf32, #tpu.memory_space<vmem>>, vector<32x128xf32>
      %28 = arith.mulf %26, %27 : vector<32x128xf32>
      %cst_16 = arith.constant dense<0.000000e+00> : vector<32xf32>
      %29 = vector.multi_reduction <add>, %28, %cst_16 [1] : vector<32x128xf32> to vector<32xf32>
      %30 = vector.shape_cast %29 : vector<32xf32> to vector<32x1xf32>
      %31 = arith.mulf %26, %26 : vector<32x128xf32>
      %cst_17 = arith.constant dense<0.000000e+00> : vector<32xf32>
      %32 = vector.multi_reduction <add>, %31, %cst_17 [1] : vector<32x128xf32> to vector<32xf32>
      %33 = vector.shape_cast %32 : vector<32xf32> to vector<32x1xf32>
      %34 = arith.mulf %27, %27 : vector<32x128xf32>
      %cst_18 = arith.constant dense<0.000000e+00> : vector<32xf32>
      %35 = vector.multi_reduction <add>, %34, %cst_18 [1] : vector<32x128xf32> to vector<32xf32>
      %36 = vector.shape_cast %35 : vector<32xf32> to vector<32x1xf32>
      %cst_19 = arith.constant 1.000000e-24 : f32
      %37 = vector.broadcast %cst_19 : f32 to vector<32x1xf32>
      %38 = arith.maximumf %33, %37 : vector<32x1xf32>
      %39 = math.rsqrt %38 : vector<32x1xf32>
      %40 = arith.mulf %30, %39 : vector<32x1xf32>
      %cst_20 = arith.constant 1.000000e-24 : f32
      %41 = vector.broadcast %cst_20 : f32 to vector<32x1xf32>
      %42 = arith.maximumf %36, %41 : vector<32x1xf32>
      %43 = math.rsqrt %42 : vector<32x1xf32>
      %44 = arith.mulf %40, %43 : vector<32x1xf32>
      %c0_21 = arith.constant 0 : index
      %c0_22 = arith.constant 0 : index
      %45 = vector.load %arg15[%c0_21, %c0_22] : memref<1x1xf32, #tpu.memory_space<vmem>>, vector<1x1xf32>
      %46 = vector.shape_cast %44 : vector<32x1xf32> to vector<1x32x1xf32>
      %cst_23 = arith.constant dense<0.000000e+00> : vector<1xf32>
      %47 = vector.multi_reduction <add>, %46, %cst_23 [1, 2] : vector<1x32x1xf32> to vector<1xf32>
      %48 = vector.shape_cast %47 : vector<1xf32> to vector<1x1x1xf32>
      %49 = vector.extract %48[0, 0, 0] : f32 from vector<1x1x1xf32>
      %50 = vector.broadcast %49 : f32 to vector<1x1xf32>
      %51 = arith.addf %45, %50 : vector<1x1xf32>
      %c0_24 = arith.constant 0 : index
      %c0_25 = arith.constant 0 : index
      %52 = vector.load %arg15[%c0_24, %c0_25] : memref<1x1xf32, #tpu.memory_space<vmem>>, vector<1x1xf32>
      tpu.vector_store %arg15[%c0_24, %c0_25], %51 {strides = array<i32>} : memref<1x1xf32, #tpu.memory_space<vmem>>, vector<1x1xf32>,
      %c1_i32_26 = arith.constant 1 : i32
      %53 = arith.cmpi eq, %arg1, %c1_i32_26 : i32
      %54 = arith.extui %53 : i1 to i32
      %c0_i32_27 = arith.constant 0 : i32
      %55 = arith.cmpi ne, %54, %c0_i32_27 : i32
      scf.if %55 {
        %c0_28 = arith.constant 0 : index
        %c0_29 = arith.constant 0 : index
        %56 = vector.load %arg15[%c0_28, %c0_29] : memref<1x1xf32, #tpu.memory_space<vmem>>, vector<1x1xf32>
        %cst_30 = arith.constant 1.562500e-02 : f32
        %57 = vector.broadcast %cst_30 : f32 to vector<1x1xf32>
        %58 = arith.mulf %56, %57 : vector<1x1xf32>
        %cst_31 = arith.constant 1.000000e+00 : f32
        %59 = vector.broadcast %cst_31 : f32 to vector<1x1xf32>
        %60 = arith.subf %59, %58 : vector<1x1xf32>
        %cst_32 = arith.constant 2.000000e+00 : f32
        %61 = vector.broadcast %cst_32 : f32 to vector<1x1xf32>
        %62 = arith.mulf %61, %60 : vector<1x1xf32>
        %c0_33 = arith.constant 0 : index
        %c0_34 = arith.constant 0 : index
        %63 = vector.load %arg10[%c0_33, %c0_34] : memref<1x1xf32, #tpu.memory_space<vmem>>, vector<1x1xf32>
        tpu.vector_store %arg10[%c0_33, %c0_34], %62 {strides = array<i32>} : memref<1x1xf32, #tpu.memory_space<vmem>>, vector<1x1xf32>,
      } else {
      }
    } else {
    }
    return
  }
  func.func @transform_0(%arg0: i32, %arg1: i32) -> (i32, i32) {
    %c1_i32 = arith.constant 1 : i32
    %0 = arith.subi %c1_i32, %arg0 : i32
    %1 = arith.muli %arg1, %0 : i32
    %c0_i32 = arith.constant 0 : i32
    %c0_i32_0 = arith.constant 0 : i32
    return %1, %c0_i32 : i32, i32
  }
  func.func @transform_1(%arg0: i32, %arg1: i32) -> (i32, i32) {
    %0 = arith.muli %arg1, %arg0 : i32
    %c0_i32 = arith.constant 0 : i32
    %c0_i32_0 = arith.constant 0 : i32
    return %0, %c0_i32 : i32, i32
  }
  func.func @transform_2(%arg0: i32, %arg1: i32) -> (i32, i32) {
    %c0_i32 = arith.constant 0 : i32
    %c0_i32_0 = arith.constant 0 : i32
    %c0_i32_1 = arith.constant 0 : i32
    return %c0_i32, %c0_i32_0 : i32, i32
  }
  func.func @transform_3(%arg0: i32, %arg1: i32) -> (i32, i32) {
    %c0_i32 = arith.constant 0 : i32
    %c0_i32_0 = arith.constant 0 : i32
    %c0_i32_1 = arith.constant 0 : i32
    return %c0_i32, %c0_i32_0 : i32, i32
  }
  func.func @transform_4(%arg0: i32, %arg1: i32) -> (i32, i32) {
    %c0_i32 = arith.constant 0 : i32
    %c0_i32_0 = arith.constant 0 : i32
    %c0_i32_1 = arith.constant 0 : i32
    return %c0_i32, %c0_i32_0 : i32, i32
  }
  func.func @transform_5(%arg0: i32, %arg1: i32) -> (i32, i32) {
    %c0_i32 = arith.constant 0 : i32
    %c0_i32_0 = arith.constant 0 : i32
    %c0_i32_1 = arith.constant 0 : i32
    return %c0_i32, %c0_i32_0 : i32, i32
  }
  func.func @transform_6(%arg0: i32, %arg1: i32) -> (i32, i32) {
    %c0_i32 = arith.constant 0 : i32
    %c0_i32_0 = arith.constant 0 : i32
    %c0_i32_1 = arith.constant 0 : i32
    return %c0_i32, %c0_i32_0 : i32, i32
  }
  func.func @transform_7(%arg0: i32, %arg1: i32) -> (i32, i32) {
    %c0_i32 = arith.constant 0 : i32
    %c0_i32_0 = arith.constant 0 : i32
    %c0_i32_1 = arith.constant 0 : i32
    return %c0_i32, %c0_i32_0 : i32, i32
  }
  func.func @transform_8(%arg0: i32, %arg1: i32) -> (i32, i32) {
    %c0_i32 = arith.constant 0 : i32
    %c0_i32_0 = arith.constant 0 : i32
    %c0_i32_1 = arith.constant 0 : i32
    return %c0_i32, %c0_i32_0 : i32, i32
  }
}

module attributes {stable_mosaic.version = 11 : i64} {
  func.func @_latent_predict_head_kernel(%arg0: i32, %arg1: i32, %arg2: memref<32x128xf32, #tpu.memory_space<vmem>>, %arg3: memref<32x128xf32, #tpu.memory_space<vmem>>, %arg4: memref<128x256xbf16, #tpu.memory_space<vmem>>, %arg5: memref<1x256xf32, #tpu.memory_space<vmem>>, %arg6: memref<1x256xf32, #tpu.memory_space<vmem>>, %arg7: memref<1x256xf32, #tpu.memory_space<vmem>>, %arg8: memref<256x128xbf16, #tpu.memory_space<vmem>>, %arg9: memref<1x128xf32, #tpu.memory_space<vmem>>, %arg10: memref<1x1xf32, #tpu.memory_space<vmem>>, %arg11: memref<1x256xf32, #tpu.memory_space<vmem>>, %arg12: memref<1x256xf32, #tpu.memory_space<vmem>>, %arg13: memref<1x256xf32, #tpu.memory_space<vmem>>, %arg14: memref<1x256xf32, #tpu.memory_space<vmem>>, %arg15: memref<1x1xf32, #tpu.memory_space<vmem>>, %arg16: memref<2x32x256xbf16, #tpu.memory_space<vmem>>) attributes {dimension_semantics = [#tpu.dimension_semantics<arbitrary>, #tpu.dimension_semantics<arbitrary>], iteration_bounds = array<i64: 2, 2>, scalar_prefetch = 0 : i64, scratch_operands = 6 : i64, tpu.core_type = #tpu.core_type<tc>, window_params = [{transform_indices = @transform_0, window_bounds = array<i64: 32, 128>}, {transform_indices = @transform_1, window_bounds = array<i64: 32, 128>}, {pipeline_mode = #tpu.pipeline_mode<synchronous>, transform_indices = @transform_2, window_bounds = array<i64: 128, 256>}, {pipeline_mode = #tpu.pipeline_mode<synchronous>, transform_indices = @transform_3, window_bounds = array<i64: 1, 256>}, {pipeline_mode = #tpu.pipeline_mode<synchronous>, transform_indices = @transform_4, window_bounds = array<i64: 1, 256>}, {pipeline_mode = #tpu.pipeline_mode<synchronous>, transform_indices = @transform_5, window_bounds = array<i64: 1, 256>}, {pipeline_mode = #tpu.pipeline_mode<synchronous>, transform_indices = @transform_6, window_bounds = array<i64: 256, 128>}, {pipeline_mode = #tpu.pipeline_mode<synchronous>, transform_indices = @transform_7, window_bounds = array<i64: 1, 128>}, {pipeline_mode = #tpu.pipeline_mode<synchronous>, transform_indices = @transform_8, window_bounds = array<i64: 1, 1>}]} {
    %c0_i32 = arith.constant 0 : i32
    %0 = arith.cmpi eq, %arg0, %c0_i32 : i32
    %1 = arith.extui %0 : i1 to i32
    %c0_i32_0 = arith.constant 0 : i32
    %2 = arith.cmpi ne, %1, %c0_i32_0 : i32
    scf.if %2 {
      %c0 = arith.constant 0 : index
      %c0_2 = arith.constant 0 : index
      %6 = vector.load %arg2[%c0, %c0_2] : memref<32x128xf32, #tpu.memory_space<vmem>>, vector<32x128xf32>
      %7 = arith.truncf %6 : vector<32x128xf32> to vector<32x128xbf16>
      %c0_3 = arith.constant 0 : index
      %c0_4 = arith.constant 0 : index
      %8 = vector.load %arg4[%c0_3, %c0_4] : memref<128x256xbf16, #tpu.memory_space<vmem>>, vector<128x256xbf16>
      %cst = arith.constant dense<0.000000e+00> : vector<32x256xf32>
      %9 = tpu.matmul %7, %8, %cst {dimension_numbers = #tpu.dot_dimension_numbers<[1], [0], [0], [1], [0, 0, 1, 1], [], []>} : vector<32x128xbf16>, vector<128x256xbf16>, vector<32x256xf32> -> vector<32x256xf32>
      %c0_5 = arith.constant 0 : index
      %c0_6 = arith.constant 0 : index
      %10 = vector.load %arg5[%c0_5, %c0_6] : memref<1x256xf32, #tpu.memory_space<vmem>>, vector<1x256xf32>
      %11 = vector.broadcast %10 : vector<1x256xf32> to vector<32x256xf32>
      %12 = arith.addf %9, %11 : vector<32x256xf32>
      %c0_i32_7 = arith.constant 0 : i32
      %13 = arith.cmpi eq, %arg1, %c0_i32_7 : i32
      %14 = arith.extui %13 : i1 to i32
      %c0_i32_8 = arith.constant 0 : i32
      %15 = arith.cmpi ne, %14, %c0_i32_8 : i32
      scf.if %15 {
        %cst_21 = arith.constant 0.000000e+00 : f32
        %32 = vector.broadcast %cst_21 : f32 to vector<1x256xf32>
        %c0_22 = arith.constant 0 : index
        %c0_23 = arith.constant 0 : index
        %33 = vector.load %arg11[%c0_22, %c0_23] : memref<1x256xf32, #tpu.memory_space<vmem>>, vector<1x256xf32>
        tpu.vector_store %arg11[%c0_22, %c0_23], %32 {strides = array<i32>} : memref<1x256xf32, #tpu.memory_space<vmem>>, vector<1x256xf32>,
        %cst_24 = arith.constant 0.000000e+00 : f32
        %34 = vector.broadcast %cst_24 : f32 to vector<1x256xf32>
        %c0_25 = arith.constant 0 : index
        %c0_26 = arith.constant 0 : index
        %35 = vector.load %arg12[%c0_25, %c0_26] : memref<1x256xf32, #tpu.memory_space<vmem>>, vector<1x256xf32>
        tpu.vector_store %arg12[%c0_25, %c0_26], %34 {strides = array<i32>} : memref<1x256xf32, #tpu.memory_space<vmem>>, vector<1x256xf32>,
      } else {
      }
      %c0_9 = arith.constant 0 : index
      %c0_10 = arith.constant 0 : index
      %16 = vector.load %arg11[%c0_9, %c0_10] : memref<1x256xf32, #tpu.memory_space<vmem>>, vector<1x256xf32>
      %cst_11 = arith.constant dense<0.000000e+00> : vector<256xf32>
      %17 = vector.multi_reduction <add>, %12, %cst_11 [0] : vector<32x256xf32> to vector<256xf32>
      %18 = vector.shape_cast %17 : vector<256xf32> to vector<1x256xf32>
      %19 = arith.addf %16, %18 : vector<1x256xf32>
      %c0_12 = arith.constant 0 : index
      %c0_13 = arith.constant 0 : index
      %20 = vector.load %arg11[%c0_12, %c0_13] : memref<1x256xf32, #tpu.memory_space<vmem>>, vector<1x256xf32>
      tpu.vector_store %arg11[%c0_12, %c0_13], %19 {strides = array<i32>} : memref<1x256xf32, #tpu.memory_space<vmem>>, vector<1x256xf32>,
      %c0_14 = arith.constant 0 : index
      %c0_15 = arith.constant 0 : index
      %21 = vector.load %arg12[%c0_14, %c0_15] : memref<1x256xf32, #tpu.memory_space<vmem>>, vector<1x256xf32>
      %22 = arith.mulf %12, %12 : vector<32x256xf32>
      %cst_16 = arith.constant dense<0.000000e+00> : vector<256xf32>
      %23 = vector.multi_reduction <add>, %22, %cst_16 [0] : vector<32x256xf32> to vector<256xf32>
      %24 = vector.shape_cast %23 : vector<256xf32> to vector<1x256xf32>
      %25 = arith.addf %21, %24 : vector<1x256xf32>
      %c0_17 = arith.constant 0 : index
      %c0_18 = arith.constant 0 : index
      %26 = vector.load %arg12[%c0_17, %c0_18] : memref<1x256xf32, #tpu.memory_space<vmem>>, vector<1x256xf32>
      tpu.vector_store %arg12[%c0_17, %c0_18], %25 {strides = array<i32>} : memref<1x256xf32, #tpu.memory_space<vmem>>, vector<1x256xf32>,
      %27 = arith.truncf %12 : vector<32x256xf32> to vector<32x256xbf16>
      %28 = arith.index_cast %arg1 : i32 to index
      %c0_19 = arith.constant 0 : index
      %c0_20 = arith.constant 0 : index
      %29 = vector.load %arg16[%28, %c0_19, %c0_20] : memref<2x32x256xbf16, #tpu.memory_space<vmem>>, vector<1x32x256xbf16>
      %30 = vector.shape_cast %29 : vector<1x32x256xbf16> to vector<32x256xbf16>
      %31 = vector.shape_cast %27 : vector<32x256xbf16> to vector<1x32x256xbf16>
      tpu.vector_store %arg16[%28, %c0_19, %c0_20], %31 {strides = array<i32>} : memref<2x32x256xbf16, #tpu.memory_space<vmem>>, vector<1x32x256xbf16>,
    } else {
    }
    %c1_i32 = arith.constant 1 : i32
    %3 = arith.cmpi eq, %arg0, %c1_i32 : i32
    %4 = arith.extui %3 : i1 to i32
    %c0_i32_1 = arith.constant 0 : i32
    %5 = arith.cmpi ne, %4, %c0_i32_1 : i32
    scf.if %5 {
      %c0_i32_2 = arith.constant 0 : i32
      %6 = arith.cmpi eq, %arg1, %c0_i32_2 : i32
      %7 = arith.extui %6 : i1 to i32
      %c0_i32_3 = arith.constant 0 : i32
      %8 = arith.cmpi ne, %7, %c0_i32_3 : i32
      scf.if %8 {
        %c0_28 = arith.constant 0 : index
        %c0_29 = arith.constant 0 : index
        %56 = vector.load %arg11[%c0_28, %c0_29] : memref<1x256xf32, #tpu.memory_space<vmem>>, vector<1x256xf32>
        %cst_30 = arith.constant 1.562500e-02 : f32
        %57 = vector.broadcast %cst_30 : f32 to vector<1x256xf32>
        %58 = arith.mulf %56, %57 : vector<1x256xf32>
        %c0_31 = arith.constant 0 : index
        %c0_32 = arith.constant 0 : index
        %59 = vector.load %arg12[%c0_31, %c0_32] : memref<1x256xf32, #tpu.memory_space<vmem>>, vector<1x256xf32>
        %cst_33 = arith.constant 1.562500e-02 : f32
        %60 = vector.broadcast %cst_33 : f32 to vector<1x256xf32>
        %61 = arith.mulf %59, %60 : vector<1x256xf32>
        %62 = arith.mulf %58, %58 : vector<1x256xf32>
        %63 = arith.subf %61, %62 : vector<1x256xf32>
        %c0_34 = arith.constant 0 : index
        %c0_35 = arith.constant 0 : index
        %64 = vector.load %arg6[%c0_34, %c0_35] : memref<1x256xf32, #tpu.memory_space<vmem>>, vector<1x256xf32>
        %cst_36 = arith.constant 9.99999974E-6 : f32
        %65 = vector.broadcast %cst_36 : f32 to vector<1x256xf32>
        %66 = arith.addf %63, %65 : vector<1x256xf32>
        %67 = math.rsqrt %66 : vector<1x256xf32>
        %68 = arith.mulf %64, %67 : vector<1x256xf32>
        %c0_37 = arith.constant 0 : index
        %c0_38 = arith.constant 0 : index
        %69 = vector.load %arg13[%c0_37, %c0_38] : memref<1x256xf32, #tpu.memory_space<vmem>>, vector<1x256xf32>
        tpu.vector_store %arg13[%c0_37, %c0_38], %68 {strides = array<i32>} : memref<1x256xf32, #tpu.memory_space<vmem>>, vector<1x256xf32>,
        %c0_39 = arith.constant 0 : index
        %c0_40 = arith.constant 0 : index
        %70 = vector.load %arg7[%c0_39, %c0_40] : memref<1x256xf32, #tpu.memory_space<vmem>>, vector<1x256xf32>
        %71 = arith.mulf %58, %68 : vector<1x256xf32>
        %72 = arith.subf %70, %71 : vector<1x256xf32>
        %c0_41 = arith.constant 0 : index
        %c0_42 = arith.constant 0 : index
        %73 = vector.load %arg14[%c0_41, %c0_42] : memref<1x256xf32, #tpu.memory_space<vmem>>, vector<1x256xf32>
        tpu.vector_store %arg14[%c0_41, %c0_42], %72 {strides = array<i32>} : memref<1x256xf32, #tpu.memory_space<vmem>>, vector<1x256xf32>,
        %cst_43 = arith.constant 0.000000e+00 : f32
        %74 = vector.broadcast %cst_43 : f32 to vector<1x1xf32>
        %c0_44 = arith.constant 0 : index
        %c0_45 = arith.constant 0 : index
        %75 = vector.load %arg15[%c0_44, %c0_45] : memref<1x1xf32, #tpu.memory_space<vmem>>, vector<1x1xf32>
        tpu.vector_store %arg15[%c0_44, %c0_45], %74 {strides = array<i32>} : memref<1x1xf32, #tpu.memory_space<vmem>>, vector<1x1xf32>,
      } else {
      }
      %9 = arith.index_cast %arg1 : i32 to index
      %c0 = arith.constant 0 : index
      %c0_4 = arith.constant 0 : index
      %10 = vector.load %arg16[%9, %c0, %c0_4] : memref<2x32x256xbf16, #tpu.memory_space<vmem>>, vector<1x32x256xbf16>
      %11 = vector.shape_cast %10 : vector<1x32x256xbf16> to vector<32x256xbf16>
      %12 = arith.extf %11 : vector<32x256xbf16> to vector<32x256xf32>
      %c0_5 = arith.constant 0 : index
      %c0_6 = arith.constant 0 : index
      %13 = vector.load %arg13[%c0_5, %c0_6] : memref<1x256xf32, #tpu.memory_space<vmem>>, vector<1x256xf32>
      %14 = vector.broadcast %13 : vector<1x256xf32> to vector<32x256xf32>
      %15 = arith.mulf %12, %14 : vector<32x256xf32>
      %c0_7 = arith.constant 0 : index
      %c0_8 = arith.constant 0 : index
      %16 = vector.load %arg14[%c0_7, %c0_8] : memref<1x256xf32, #tpu.memory_space<vmem>>, vector<1x256xf32>
      %17 = vector.broadcast %16 : vector<1x256xf32> to vector<32x256xf32>
      %18 = arith.addf %15, %17 : vector<32x256xf32>
      %cst = arith.constant 0.000000e+00 : f32
      %19 = vector.broadcast %cst : f32 to vector<32x256xf32>
      %20 = arith.maximumf %18, %19 : vector<32x256xf32>
      %21 = arith.truncf %20 : vector<32x256xf32> to vector<32x256xbf16>
      %c0_9 = arith.constant 0 : index
      %c0_10 = arith.constant 0 : index
      %22 = vector.load %arg8[%c0_9, %c0_10] : memref<256x128xbf16, #tpu.memory_space<vmem>>, vector<256x128xbf16>
      %cst_11 = arith.constant dense<0.000000e+00> : vector<32x128xf32>
      %23 = tpu.matmul %21, %22, %cst_11 {dimension_numbers = #tpu.dot_dimension_numbers<[1], [0], [0], [1], [0, 0, 1, 1], [], []>} : vector<32x256xbf16>, vector<256x128xbf16>, vector<32x128xf32> -> vector<32x128xf32>
      %c0_12 = arith.constant 0 : index
      %c0_13 = arith.constant 0 : index
      %24 = vector.load %arg9[%c0_12, %c0_13] : memref<1x128xf32, #tpu.memory_space<vmem>>, vector<1x128xf32>
      %25 = vector.broadcast %24 : vector<1x128xf32> to vector<32x128xf32>
      %26 = arith.addf %23, %25 : vector<32x128xf32>
      %c0_14 = arith.constant 0 : index
      %c0_15 = arith.constant 0 : index
      %27 = vector.load %arg3[%c0_14, %c0_15] : memref<32x128xf32, #tpu.memory_space<vmem>>, vector<32x128xf32>
      %28 = arith.mulf %26, %27 : vector<32x128xf32>
      %cst_16 = arith.constant dense<0.000000e+00> : vector<32xf32>
      %29 = vector.multi_reduction <add>, %28, %cst_16 [1] : vector<32x128xf32> to vector<32xf32>
      %30 = vector.shape_cast %29 : vector<32xf32> to vector<32x1xf32>
      %31 = arith.mulf %26, %26 : vector<32x128xf32>
      %cst_17 = arith.constant dense<0.000000e+00> : vector<32xf32>
      %32 = vector.multi_reduction <add>, %31, %cst_17 [1] : vector<32x128xf32> to vector<32xf32>
      %33 = vector.shape_cast %32 : vector<32xf32> to vector<32x1xf32>
      %34 = arith.mulf %27, %27 : vector<32x128xf32>
      %cst_18 = arith.constant dense<0.000000e+00> : vector<32xf32>
      %35 = vector.multi_reduction <add>, %34, %cst_18 [1] : vector<32x128xf32> to vector<32xf32>
      %36 = vector.shape_cast %35 : vector<32xf32> to vector<32x1xf32>
      %cst_19 = arith.constant 1.000000e-24 : f32
      %37 = vector.broadcast %cst_19 : f32 to vector<32x1xf32>
      %38 = arith.maximumf %33, %37 : vector<32x1xf32>
      %39 = math.rsqrt %38 : vector<32x1xf32>
      %40 = arith.mulf %30, %39 : vector<32x1xf32>
      %cst_20 = arith.constant 1.000000e-24 : f32
      %41 = vector.broadcast %cst_20 : f32 to vector<32x1xf32>
      %42 = arith.maximumf %36, %41 : vector<32x1xf32>
      %43 = math.rsqrt %42 : vector<32x1xf32>
      %44 = arith.mulf %40, %43 : vector<32x1xf32>
      %c0_21 = arith.constant 0 : index
      %c0_22 = arith.constant 0 : index
      %45 = vector.load %arg15[%c0_21, %c0_22] : memref<1x1xf32, #tpu.memory_space<vmem>>, vector<1x1xf32>
      %46 = vector.shape_cast %44 : vector<32x1xf32> to vector<1x32x1xf32>
      %cst_23 = arith.constant dense<0.000000e+00> : vector<1xf32>
      %47 = vector.multi_reduction <add>, %46, %cst_23 [1, 2] : vector<1x32x1xf32> to vector<1xf32>
      %48 = vector.shape_cast %47 : vector<1xf32> to vector<1x1x1xf32>
      %49 = vector.extract %48[0, 0, 0] : f32 from vector<1x1x1xf32>
      %50 = vector.broadcast %49 : f32 to vector<1x1xf32>
      %51 = arith.addf %45, %50 : vector<1x1xf32>
      %c0_24 = arith.constant 0 : index
      %c0_25 = arith.constant 0 : index
      %52 = vector.load %arg15[%c0_24, %c0_25] : memref<1x1xf32, #tpu.memory_space<vmem>>, vector<1x1xf32>
      tpu.vector_store %arg15[%c0_24, %c0_25], %51 {strides = array<i32>} : memref<1x1xf32, #tpu.memory_space<vmem>>, vector<1x1xf32>,
      %c1_i32_26 = arith.constant 1 : i32
      %53 = arith.cmpi eq, %arg1, %c1_i32_26 : i32
      %54 = arith.extui %53 : i1 to i32
      %c0_i32_27 = arith.constant 0 : i32
      %55 = arith.cmpi ne, %54, %c0_i32_27 : i32
      scf.if %55 {
        %c0_28 = arith.constant 0 : index
        %c0_29 = arith.constant 0 : index
        %56 = vector.load %arg15[%c0_28, %c0_29] : memref<1x1xf32, #tpu.memory_space<vmem>>, vector<1x1xf32>
        %cst_30 = arith.constant 1.562500e-02 : f32
        %57 = vector.broadcast %cst_30 : f32 to vector<1x1xf32>
        %58 = arith.mulf %56, %57 : vector<1x1xf32>
        %cst_31 = arith.constant 1.000000e+00 : f32
        %59 = vector.broadcast %cst_31 : f32 to vector<1x1xf32>
        %60 = arith.subf %59, %58 : vector<1x1xf32>
        %cst_32 = arith.constant 2.000000e+00 : f32
        %61 = vector.broadcast %cst_32 : f32 to vector<1x1xf32>
        %62 = arith.mulf %61, %60 : vector<1x1xf32>
        %c0_33 = arith.constant 0 : index
        %c0_34 = arith.constant 0 : index
        %63 = vector.load %arg10[%c0_33, %c0_34] : memref<1x1xf32, #tpu.memory_space<vmem>>, vector<1x1xf32>
        tpu.vector_store %arg10[%c0_33, %c0_34], %62 {strides = array<i32>} : memref<1x1xf32, #tpu.memory_space<vmem>>, vector<1x1xf32>,
      } else {
      }
    } else {
    }
    return
  }
  func.func @transform_0(%arg0: i32, %arg1: i32) -> (i32, i32) {
    %c1_i32 = arith.constant 1 : i32
    %0 = arith.subi %c1_i32, %arg0 : i32
    %1 = arith.muli %arg1, %0 : i32
    %c0_i32 = arith.constant 0 : i32
    %c0_i32_0 = arith.constant 0 : i32
    return %1, %c0_i32 : i32, i32
  }
  func.func @transform_1(%arg0: i32, %arg1: i32) -> (i32, i32) {
    %0 = arith.muli %arg1, %arg0 : i32
    %c0_i32 = arith.constant 0 : i32
    %c0_i32_0 = arith.constant 0 : i32
    return %0, %c0_i32 : i32, i32
  }
  func.func @transform_2(%arg0: i32, %arg1: i32) -> (i32, i32) {
    %c0_i32 = arith.constant 0 : i32
    %c0_i32_0 = arith.constant 0 : i32
    %c0_i32_1 = arith.constant 0 : i32
    return %c0_i32, %c0_i32_0 : i32, i32
  }
  func.func @transform_3(%arg0: i32, %arg1: i32) -> (i32, i32) {
    %c0_i32 = arith.constant 0 : i32
    %c0_i32_0 = arith.constant 0 : i32
    %c0_i32_1 = arith.constant 0 : i32
    return %c0_i32, %c0_i32_0 : i32, i32
  }
  func.func @transform_4(%arg0: i32, %arg1: i32) -> (i32, i32) {
    %c0_i32 = arith.constant 0 : i32
    %c0_i32_0 = arith.constant 0 : i32
    %c0_i32_1 = arith.constant 0 : i32
    return %c0_i32, %c0_i32_0 : i32, i32
  }
  func.func @transform_5(%arg0: i32, %arg1: i32) -> (i32, i32) {
    %c0_i32 = arith.constant 0 : i32
    %c0_i32_0 = arith.constant 0 : i32
    %c0_i32_1 = arith.constant 0 : i32
    return %c0_i32, %c0_i32_0 : i32, i32
  }
  func.func @transform_6(%arg0: i32, %arg1: i32) -> (i32, i32) {
    %c0_i32 = arith.constant 0 : i32
    %c0_i32_0 = arith.constant 0 : i32
    %c0_i32_1 = arith.constant 0 : i32
    return %c0_i32, %c0_i32_0 : i32, i32
  }
  func.func @transform_7(%arg0: i32, %arg1: i32) -> (i32, i32) {
    %c0_i32 = arith.constant 0 : i32
    %c0_i32_0 = arith.constant 0 : i32
    %c0_i32_1 = arith.constant 0 : i32
    return %c0_i32, %c0_i32_0 : i32, i32
  }
  func.func @transform_8(%arg0: i32, %arg1: i32) -> (i32, i32) {
    %c0_i32 = arith.constant 0 : i32
    %c0_i32_0 = arith.constant 0 : i32
    %c0_i32_1 = arith.constant 0 : i32
    return %c0_i32, %c0_i32_0 : i32, i32
  }
}

</mosaic_0001>

<llo_original>
// kernel: tpu_custom_call.1
$region0: #{tpu_custom_call.1}
  #allocation0 [shape = 'u32[]', space=smem, size = 0x4, offset = 0x4, fixed_abs, tag = 'smem constant byte address 0x4 - core index']
  #allocation1 [shape = 'u32[144,128]{1,0:T(1,128)}', space=vmem, size = 0x12000, scoped, tag = 'internal scratch']
  #allocation2 [shape = 'f32[1,256]{1,0:T(1,128)}', space=vmem, size = 0x400, scoped, tag = 'scratch operand']
  #allocation3 [shape = 'f32[1,256]{1,0:T(1,128)}', space=vmem, size = 0x400, scoped, tag = 'scratch operand']
  #allocation4 [shape = 'f32[1,256]{1,0:T(1,128)}', space=vmem, size = 0x400, scoped, tag = 'scratch operand']
  #allocation5 [shape = 'f32[1,256]{1,0:T(1,128)}', space=vmem, size = 0x400, scoped, tag = 'scratch operand']
  #allocation6 [shape = 'f32[1,1]{1,0:T(1,128)}', space=vmem, size = 0x200, scoped, tag = 'scratch operand']
  #allocation7 [shape = 'bf16[2,32,256]{2,1,0:T(16,128)(2,1)}', space=vmem, size = 0x8000, scoped, tag = 'scratch operand']
  %s0 = inlined_call_operand.hbm [shape: f32[64,128], index: 0, kind: input, shape index: {}]
  %s1 = inlined_call_operand.hbm [shape: f32[64,128], index: 1, kind: input, shape index: {}]
  %s2 = inlined_call_operand.hbm [shape: bf16[128,256], index: 2, kind: input, shape index: {}]
  %s3 = inlined_call_operand.vmem [shape: f32[1,256], index: 3, kind: input, shape index: {}]
  %s4 = inlined_call_operand.vmem [shape: f32[1,256], index: 4, kind: input, shape index: {}]
  %s5 = inlined_call_operand.vmem [shape: f32[1,256], index: 5, kind: input, shape index: {}]
  %s6 = inlined_call_operand.hbm [shape: bf16[256,128], index: 6, kind: input, shape index: {}]
  %s7 = inlined_call_operand.vmem [shape: f32[1,128], index: 7, kind: input, shape index: {}]
  %s8 = inlined_call_operand.hbm [shape: f32[1,1], index: 8, kind: output, shape index: {}]
  %s9 = sld [smem:[#allocation0]]
  $region101: #{tpu_custom_call.1} parent=0
    _
  %s11 = ssub.s32 1, %s9
  %s12 = scalar_select 0, %s11, %s9
  $region1: #{tpu_custom_call.1} parent=0
    #allocation8 [shape = 'u8[32768]{0}', space=vmem, size = 0x8000, scoped, tag = 'input window, operand 0']
    #allocation9 [shape = 's32[2]{0}', space=sflag, size = 0x8, scoped, tag = 'scoped memory for tpu_custom_call.1']
    #allocation10 [shape = 's32[2]{0}', space=sflag, size = 0x8, scoped, tag = 'scoped memory for tpu_custom_call.1']
    #allocation11 [shape = 'u8[32768]{0}', space=vmem, size = 0x8000, scoped, tag = 'input window, operand 1']
    #allocation12 [shape = 's32[2]{0}', space=sflag, size = 0x8, scoped, tag = 'scoped memory for tpu_custom_call.1']
    #allocation13 [shape = 'u8[65536]{0}', space=vmem, size = 0x10000, scoped, tag = 'input window, operand 2, single buffered']
    #allocation14 [shape = 'u8[65536]{0}', space=vmem, size = 0x10000, scoped, tag = 'input window, operand 6, single buffered']
    #allocation15 [shape = 's32[1]{0}', space=sflag, size = 0x4, scoped, tag = 'scoped memory for tpu_custom_call.1']
    #allocation16 [shape = 'u8[512]{0}', space=vmem, size = 0x400, scoped, tag = 'output window, operand 0, single buffered']
    %13 = vsyncpa [#allocation9], 0
    %s14 = scalar_lea.sflag [#allocation9], 1
    %15 = vsyncpa %s14, 0
    %16 = vsyncpa [#allocation12], 0
    %s17 = scalar_lea.sflag [#allocation12], 1
    %18 = vsyncpa %s17, 0
    %19 = vsyncpa [#allocation15], 0
    %20 = vsyncpa [#allocation10], 0
    loop: start=0, step=1, limit=6
    $region2: #{tpu_custom_call.1} parent=1 // loop_pre_header
      _
    $region3: #{tpu_custom_call.1} parent=1 // loop_header
      %s22 = sphi 0, %s26
      %p23 = scmp.ge.s32.totalorder %s22, 6
      %s29 = sphi 0, %s41
      %s30 = sphi 0, %s37
      %s31 = sphi 0, %s29
      %s32 = sphi 0, %s30
      %s33 = sphi 0, %s31
      %s34 = sphi 0, %s32
      %s48 = sphi 0, %s50
      %s51 = sphi 0, %s48
      %s52 = sphi 0, %s51
      %s68 = sphi 0, %s52
      %s76 = sphi 0, %s78
      %s79 = sphi 0, %s76
      %s80 = sphi 0, %s79
      %s96 = sphi 0, %s80
      %s100 = sphi 0, %s100
      %s102 = sphi 0, %s100
      %s103 = sphi 0, %s102
      %s117 = sphi 0, %s103
      %s121 = sphi 0, %s121
      %s123 = sphi 0, %s121
      %s124 = sphi 0, %s123
      %s138 = sphi 0, %s124
      %s142 = sphi 0, %s142
      %s144 = sphi 0, %s142
      %s145 = sphi 0, %s144
      %s159 = sphi 0, %s145
      %s163 = sphi 0, %s163
      %s165 = sphi 0, %s163
      %s166 = sphi 0, %s165
      %s180 = sphi 0, %s166
      %s184 = sphi 0, %s184
      %s186 = sphi 0, %s184
      %s187 = sphi 0, %s186
      %s201 = sphi 0, %s187
      %s205 = sphi 0, %s205
      %s207 = sphi 0, %s205
      %s208 = sphi 0, %s207
      %s222 = sphi 0, %s208
      %s226 = sphi 0, %s226
      %s228 = sphi 0, %s226
      %s229 = sphi 0, %s228
      %s243 = sphi 0, %s229
    $region4: #{tpu_custom_call.1} parent=1 // loop_header_branch
      %25 = sbr.rel (%p23) target = $region8
    $region5: #{tpu_custom_call.1} parent=1 // loop_body
      %s27 = ssub.s32 %s22, 1
      %s28 = ssub.s32 %s22, 2
      %s35 = sadd.s32 1, %s30
      %p36 = scmp.ge.s32.totalorder %s35, 2
      %s37 = scalar_select %p36, 0, %s35
      %s38 = sadd.s32 1, %s29
      %s39 = scalar_select %p36, %s38, %s29
      %p40 = scmp.ge.s32.totalorder %s39, 2
      %s41 = scalar_select %p40, 0, %s39
      %s42 = ssub.s32 1, %s29
      %s43 = smul.u32 %s30, %s42
      %s44 = ssub.s32 1, %s41
      %s45 = smul.u32 %s37, %s44
      %s46 = ssub.s32 %s43, %s45
      %p47 = scmp.eq.s32.totalorder %s46, 0
      %s49 = sadd.s32 %s48, 1
      %s50 = scalar_select %p47, %s48, %s49
      %p53 = pneg %p47
      %p54 = scmp.eq.s32.totalorder %s22, 3
      %p55 = por %p53, %p54
      %p56 = scmp.ne.s32.totalorder %s48, %s51
      %p57 = scmp.eq.s32.totalorder %s22, 0
      %p58 = por %p56, %p57
      %p59 = scmp.ne.s32.totalorder %s48, %s51
      %p60 = scmp.eq.s32.totalorder %s27, 3
      %p61 = por %p59, %p60
      %p62 = scmp.ne.s32.totalorder %s51, %s52
      %p63 = scmp.eq.s32.totalorder %s27, 0
      %p64 = por %p62, %p63
      %p65 = scmp.ne.s32.totalorder %s51, %s52
      %p66 = scmp.eq.s32.totalorder %s28, 3
      %p67 = por %p65, %p66
      %p69 = scmp.ne.s32.totalorder %s52, %s68
      %p70 = scmp.eq.s32.totalorder %s28, 0
      %p71 = por %p69, %p70
      %s72 = smul.u32 %s30, %s29
      %s73 = smul.u32 %s37, %s41
      %s74 = ssub.s32 %s72, %s73
      %p75 = scmp.eq.s32.totalorder %s74, 0
      %s77 = sadd.s32 %s76, 1
      %s78 = scalar_select %p75, %s76, %s77
      %p81 = pneg %p75
      %p82 = scmp.eq.s32.totalorder %s22, 3
      %p83 = por %p81, %p82
      %p84 = scmp.ne.s32.totalorder %s76, %s79
      %p85 = scmp.eq.s32.totalorder %s22, 0
      %p86 = por %p84, %p85
      %p87 = scmp.ne.s32.totalorder %s76, %s79
      %p88 = scmp.eq.s32.totalorder %s27, 3
      %p89 = por %p87, %p88
      %p90 = scmp.ne.s32.totalorder %s79, %s80
      %p91 = scmp.eq.s32.totalorder %s27, 0
      %p92 = por %p90, %p91
      %p93 = scmp.ne.s32.totalorder %s79, %s80
      %p94 = scmp.eq.s32.totalorder %s28, 3
      %p95 = por %p93, %p94
      %p97 = scmp.ne.s32.totalorder %s80, %s96
      %p98 = scmp.eq.s32.totalorder %s28, 0
      %p99 = por %p97, %p98
      %s101 = sadd.s32 %s100, 1
      %p104 = scmp.eq.s32.totalorder %s22, 3
      %p105 = scmp.ne.s32.totalorder %s100, %s102
      %p106 = scmp.eq.s32.totalorder %s22, 0
      %p107 = por %p105, %p106
      %p108 = scmp.ne.s32.totalorder %s100, %s102
      %p109 = scmp.eq.s32.totalorder %s27, 3
      %p110 = por %p108, %p109
      %p111 = scmp.ne.s32.totalorder %s102, %s103
      %p112 = scmp.eq.s32.totalorder %s27, 0
      %p113 = por %p111, %p112
      %p114 = scmp.ne.s32.totalorder %s102, %s103
      %p115 = scmp.eq.s32.totalorder %s28, 3
      %p116 = por %p114, %p115
      %p118 = scmp.ne.s32.totalorder %s103, %s117
      %p119 = scmp.eq.s32.totalorder %s28, 0
      %p120 = por %p118, %p119
      %s122 = sadd.s32 %s121, 1
      %p125 = scmp.eq.s32.totalorder %s22, 3
      %p126 = scmp.ne.s32.totalorder %s121, %s123
      %p127 = scmp.eq.s32.totalorder %s22, 0
      %p128 = por %p126, %p127
      %p129 = scmp.ne.s32.totalorder %s121, %s123
      %p130 = scmp.eq.s32.totalorder %s27, 3
      %p131 = por %p129, %p130
      %p132 = scmp.ne.s32.totalorder %s123, %s124
      %p133 = scmp.eq.s32.totalorder %s27, 0
      %p134 = por %p132, %p133
      %p135 = scmp.ne.s32.totalorder %s123, %s124
      %p136 = scmp.eq.s32.totalorder %s28, 3
      %p137 = por %p135, %p136
      %p139 = scmp.ne.s32.totalorder %s124, %s138
      %p140 = scmp.eq.s32.totalorder %s28, 0
      %p141 = por %p139, %p140
      %s143 = sadd.s32 %s142, 1
      %p146 = scmp.eq.s32.totalorder %s22, 3
      %p147 = scmp.ne.s32.totalorder %s142, %s144
      %p148 = scmp.eq.s32.totalorder %s22, 0
      %p149 = por %p147, %p148
      %p150 = scmp.ne.s32.totalorder %s142, %s144
      %p151 = scmp.eq.s32.totalorder %s27, 3
      %p152 = por %p150, %p151
      %p153 = scmp.ne.s32.totalorder %s144, %s145
      %p154 = scmp.eq.s32.totalorder %s27, 0
      %p155 = por %p153, %p154
      %p156 = scmp.ne.s32.totalorder %s144, %s145
      %p157 = scmp.eq.s32.totalorder %s28, 3
      %p158 = por %p156, %p157
      %p160 = scmp.ne.s32.totalorder %s145, %s159
      %p161 = scmp.eq.s32.totalorder %s28, 0
      %p162 = por %p160, %p161
      %s164 = sadd.s32 %s163, 1
      %p167 = scmp.eq.s32.totalorder %s22, 3
      %p168 = scmp.ne.s32.totalorder %s163, %s165
      %p169 = scmp.eq.s32.totalorder %s22, 0
      %p170 = por %p168, %p169
      %p171 = scmp.ne.s32.totalorder %s163, %s165
      %p172 = scmp.eq.s32.totalorder %s27, 3
      %p173 = por %p171, %p172
      %p174 = scmp.ne.s32.totalorder %s165, %s166
      %p175 = scmp.eq.s32.totalorder %s27, 0
      %p176 = por %p174, %p175
      %p177 = scmp.ne.s32.totalorder %s165, %s166
      %p178 = scmp.eq.s32.totalorder %s28, 3
      %p179 = por %p177, %p178
      %p181 = scmp.ne.s32.totalorder %s166, %s180
      %p182 = scmp.eq.s32.totalorder %s28, 0
      %p183 = por %p181, %p182
      %s185 = sadd.s32 %s184, 1
      %p188 = scmp.eq.s32.totalorder %s22, 3
      %p189 = scmp.ne.s32.totalorder %s184, %s186
      %p190 = scmp.eq.s32.totalorder %s22, 0
      %p191 = por %p189, %p190
      %p192 = scmp.ne.s32.totalorder %s184, %s186
      %p193 = scmp.eq.s32.totalorder %s27, 3
      %p194 = por %p192, %p193
      %p195 = scmp.ne.s32.totalorder %s186, %s187
      %p196 = scmp.eq.s32.totalorder %s27, 0
      %p197 = por %p195, %p196
      %p198 = scmp.ne.s32.totalorder %s186, %s187
      %p199 = scmp.eq.s32.totalorder %s28, 3
      %p200 = por %p198, %p199
      %p202 = scmp.ne.s32.totalorder %s187, %s201
      %p203 = scmp.eq.s32.totalorder %s28, 0
      %p204 = por %p202, %p203
      %s206 = sadd.s32 %s205, 1
      %p209 = scmp.eq.s32.totalorder %s22, 3
      %p210 = scmp.ne.s32.totalorder %s205, %s207
      %p211 = scmp.eq.s32.totalorder %s22, 0
      %p212 = por %p210, %p211
      %p213 = scmp.ne.s32.totalorder %s205, %s207
      %p214 = scmp.eq.s32.totalorder %s27, 3
      %p215 = por %p213, %p214
      %p216 = scmp.ne.s32.totalorder %s207, %s208
      %p217 = scmp.eq.s32.totalorder %s27, 0
      %p218 = por %p216, %p217
      %p219 = scmp.ne.s32.totalorder %s207, %s208
      %p220 = scmp.eq.s32.totalorder %s28, 3
      %p221 = por %p219, %p220
      %p223 = scmp.ne.s32.totalorder %s208, %s222
      %p224 = scmp.eq.s32.totalorder %s28, 0
      %p225 = por %p223, %p224
      %s227 = sadd.s32 %s226, 1
      %p230 = scmp.eq.s32.totalorder %s22, 3
      %p231 = scmp.ne.s32.totalorder %s226, %s228
      %p232 = scmp.eq.s32.totalorder %s22, 0
      %p233 = por %p231, %p232
      %p234 = scmp.ne.s32.totalorder %s226, %s228
      %p235 = scmp.eq.s32.totalorder %s27, 3
      %p236 = por %p234, %p235
      %p237 = scmp.ne.s32.totalorder %s228, %s229
      %p238 = scmp.eq.s32.totalorder %s27, 0
      %p239 = por %p237, %p238
      %p240 = scmp.ne.s32.totalorder %s228, %s229
      %p241 = scmp.eq.s32.totalorder %s28, 3
      %p242 = por %p240, %p241
      %p244 = scmp.ne.s32.totalorder %s229, %s243
      %p245 = scmp.eq.s32.totalorder %s28, 0
      %p246 = por %p244, %p245
      %p247 = scmp.le.s32.totalorder 1, %s22
      %p248 = scmp.lt.s32.totalorder %s22, 5
      %p249 = pnand %p247, %p248
      %p250 = pneg %p249
      // Predicated region
      $region9: #{tpu_custom_call.1} parent=5 // pred_check
        _
      $region10: #{tpu_custom_call.1} parent=5 // pred_check_branch
        %252 = sbr.rel (%p249) target = $region12
      $region11: #{tpu_custom_call.1} parent=5 // pred_region
        %s253 = ssub.s32 %s22, 1
        // Predicated region
        $region13: #{tpu_custom_call.1} parent=11 // pred_check
          %p254 = pneg %p113
        $region14: #{tpu_custom_call.1} parent=11 // pred_check_branch
          %256 = sbr.rel (%p254) target = $region16
        $region15: #{tpu_custom_call.1} parent=11 // pred_region
          %s258 = ssub.s32 2048, 2048
          %259 = vsyncadd [#allocation12], %s258
          %s260 = sshll.u32 [#allocation13], 4
          %s261 = int_to_ptr.vmem [resolvable:$true] %s260
          %266 = dma.hbm_to_vmem [thread:$0]  %s2, 2048, %s261, [#allocation12], 128, 128, 8
        $region16: #{tpu_custom_call.1} parent=11 // pred_fallthru
          _
        // Predicated region
        $region17: #{tpu_custom_call.1} parent=11 // pred_check
          %p267 = pneg %p134
        $region18: #{tpu_custom_call.1} parent=11 // pred_check_branch
          %269 = sbr.rel (%p267) target = $region20
        $region19: #{tpu_custom_call.1} parent=11 // pred_region
          _
        $region20: #{tpu_custom_call.1} parent=11 // pred_fallthru
          _
        // Predicated region
        $region21: #{tpu_custom_call.1} parent=11 // pred_check
          %p270 = pneg %p155
        $region22: #{tpu_custom_call.1} parent=11 // pred_check_branch
          %272 = sbr.rel (%p270) target = $region24
        $region23: #{tpu_custom_call.1} parent=11 // pred_region
          _
        $region24: #{tpu_custom_call.1} parent=11 // pred_fallthru
          _
        // Predicated region
        $region25: #{tpu_custom_call.1} parent=11 // pred_check
          %p273 = pneg %p176
        $region26: #{tpu_custom_call.1} parent=11 // pred_check_branch
          %275 = sbr.rel (%p273) target = $region28
        $region27: #{tpu_custom_call.1} parent=11 // pred_region
          _
        $region28: #{tpu_custom_call.1} parent=11 // pred_fallthru
          _
        // Predicated region
        $region29: #{tpu_custom_call.1} parent=11 // pred_check
          %p276 = pneg %p197
        $region30: #{tpu_custom_call.1} parent=11 // pred_check_branch
          %278 = sbr.rel (%p276) target = $region32
        $region31: #{tpu_custom_call.1} parent=11 // pred_region
          %s280 = ssub.s32 2048, 2048
          %281 = vsyncadd [#allocation15], %s280
          %s282 = sshll.u32 [#allocation14], 4
          %s283 = int_to_ptr.vmem [resolvable:$true] %s282
          %288 = dma.hbm_to_vmem [thread:$0]  %s6, 2048, %s283, [#allocation15], 64, 64, 4
        $region32: #{tpu_custom_call.1} parent=11 // pred_fallthru
          _
        // Predicated region
        $region33: #{tpu_custom_call.1} parent=11 // pred_check
          %p289 = pneg %p218
        $region34: #{tpu_custom_call.1} parent=11 // pred_check_branch
          %291 = sbr.rel (%p289) target = $region36
        $region35: #{tpu_custom_call.1} parent=11 // pred_region
          _
        $region36: #{tpu_custom_call.1} parent=11 // pred_fallthru
          _
      $region12: #{tpu_custom_call.1} parent=5 // pred_fallthru
        _
      %p292 = scmp.lt.s32.totalorder %s22, 4
      // Predicated region
      $region37: #{tpu_custom_call.1} parent=5 // pred_check
        %p293 = pneg %p292
      $region38: #{tpu_custom_call.1} parent=5 // pred_check_branch
        %295 = sbr.rel (%p293) target = $region40
      $region39: #{tpu_custom_call.1} parent=5 // pred_region
        // Predicated region
        $region41: #{tpu_custom_call.1} parent=39 // pred_check
          %p296 = pneg %p58
        $region42: #{tpu_custom_call.1} parent=39 // pred_check_branch
          %298 = sbr.rel (%p296) target = $region44
        $region43: #{tpu_custom_call.1} parent=39 // pred_region
          %s299 = sand.u32 %s48, 1
          %s300 = scalar_lea.sflag [#allocation9], %s299
          %s301 = sand.u32 %s48, 1
          %s302 = smul.addr %s301, 32
          %s303 = scalar_lea.vmem [#allocation8], %s302
          %s304 = ssub.s32 1, %s29
          %s305 = smul.u32 %s30, %s304
          %s306 = smul.u32 4, %s305
          %s308 = ssub.s32 512, 512
          %309 = vsyncadd %s300, %s308
          %s310 = smul.addr %s306, 128
          %s311 = scalar_lea.hbm %s0, %s310
          %s312 = sshll.u32 %s303, 4
          %s313 = int_to_ptr.vmem [resolvable:$true] %s312
          %318 = dma.hbm_to_vmem [thread:$0]  %s311, 512, %s313, %s300, 128, 128, 8
        $region44: #{tpu_custom_call.1} parent=39 // pred_fallthru
          _
        // Predicated region
        $region45: #{tpu_custom_call.1} parent=39 // pred_check
          %p319 = pneg %p86
        $region46: #{tpu_custom_call.1} parent=39 // pred_check_branch
          %321 = sbr.rel (%p319) target = $region48
        $region47: #{tpu_custom_call.1} parent=39 // pred_region
          %s322 = sand.u32 %s22, 1
          %s323 = scalar_lea.sflag [#allocation12], %s322
          %s324 = sand.u32 %s76, 1
          %s325 = smul.addr %s324, 32
          %s326 = scalar_lea.vmem [#allocation11], %s325
          %s327 = smul.u32 %s30, %s29
          %s328 = smul.u32 4, %s327
          %s330 = ssub.s32 512, 512
          %331 = vsyncadd %s323, %s330
          %s332 = smul.addr %s328, 128
          %s333 = scalar_lea.hbm %s1, %s332
          %s334 = sshll.u32 %s326, 4
          %s335 = int_to_ptr.vmem [resolvable:$true] %s334
          %340 = dma.hbm_to_vmem [thread:$0]  %s333, 512, %s335, %s323, 128, 128, 8
        $region48: #{tpu_custom_call.1} parent=39 // pred_fallthru
          _
      $region40: #{tpu_custom_call.1} parent=5 // pred_fallthru
        _
      %p341 = scmp.le.s32.totalorder 1, %s22
      %p342 = scmp.lt.s32.totalorder %s22, 5
      %p343 = pnand %p341, %p342
      %p344 = pneg %p343
      // Predicated region
      $region49: #{tpu_custom_call.1} parent=5 // pred_check
        _
      $region50: #{tpu_custom_call.1} parent=5 // pred_check_branch
        %346 = sbr.rel (%p343) target = $region52
      $region51: #{tpu_custom_call.1} parent=5 // pred_region
        %s347 = ssub.s32 %s22, 1
        %s348 = sand.u32 %s51, 1
        %s349 = scalar_lea.sflag [#allocation9], %s348
        %s350 = sand.u32 %s51, 1
        %s351 = smul.addr %s350, 32
        %s352 = scalar_lea.vmem [#allocation8], %s351
        // Predicated region
        $region53: #{tpu_custom_call.1} parent=51 // pred_check
          %p353 = pneg %p64
        $region54: #{tpu_custom_call.1} parent=51 // pred_check_branch
          %355 = sbr.rel (%p353) target = $region56
        $region55: #{tpu_custom_call.1} parent=51 // pred_region
          %356 = dma.done %s349, 512
        $region56: #{tpu_custom_call.1} parent=51 // pred_fallthru
          _
        %s357 = sand.u32 %s27, 1
        %s358 = scalar_lea.sflag [#allocation12], %s357
        %s359 = sand.u32 %s79, 1
        %s360 = smul.addr %s359, 32
        %s361 = scalar_lea.vmem [#allocation11], %s360
        // Predicated region
        $region57: #{tpu_custom_call.1} parent=51 // pred_check
          %p362 = pneg %p92
        $region58: #{tpu_custom_call.1} parent=51 // pred_check_branch
          %364 = sbr.rel (%p362) target = $region60
        $region59: #{tpu_custom_call.1} parent=51 // pred_region
          %365 = dma.done %s358, 512
        $region60: #{tpu_custom_call.1} parent=51 // pred_fallthru
          _
        // Predicated region
        $region61: #{tpu_custom_call.1} parent=51 // pred_check
          %p366 = pneg %p113
        $region62: #{tpu_custom_call.1} parent=51 // pred_check_branch
          %368 = sbr.rel (%p366) target = $region64
        $region63: #{tpu_custom_call.1} parent=51 // pred_region
          %369 = dma.done [#allocation12], 2048
        $region64: #{tpu_custom_call.1} parent=51 // pred_fallthru
          _
        // Predicated region
        $region65: #{tpu_custom_call.1} parent=51 // pred_check
          %p370 = pneg %p197
        $region66: #{tpu_custom_call.1} parent=51 // pred_check_branch
          %372 = sbr.rel (%p370) target = $region68
        $region67: #{tpu_custom_call.1} parent=51 // pred_region
          %373 = dma.done [#allocation15], 2048
        $region68: #{tpu_custom_call.1} parent=51 // pred_fallthru
          _
        %s374 = sand.u32 %s51, 1
        %s375 = scalar_lea.sflag [#allocation9], %s374
        %s376 = sand.u32 %s51, 1
        %s377 = smul.addr %s376, 32
        %s378 = scalar_lea.vmem [#allocation8], %s377
        %p379 = pneg %p64
        %p380 = pneg %p61
        %s381 = sand.u32 %s27, 1
        %s382 = scalar_lea.sflag [#allocation12], %s381
        %s383 = sand.u32 %s79, 1
        %s384 = smul.addr %s383, 32
        %s385 = scalar_lea.vmem [#allocation11], %s384
        %p386 = pneg %p92
        %p387 = pneg %p89
        %p388 = pneg %p113
        %p389 = pneg %p110
        %p390 = pneg %p134
        %p391 = pneg %p131
        %p392 = pneg %p155
        %p393 = pneg %p152
        %p394 = pneg %p176
        %p395 = pneg %p173
        %p396 = pneg %p197
        %p397 = pneg %p194
        %p398 = pneg %p218
        %p399 = pneg %p215
        %p400 = pneg %p239
        %p401 = pneg %p236
        %s402 = ssub.s32 1, %s31
        %s403 = smul.u32 %s32, %s402
        %s404 = smul.u32 4, %s403
        %s405 = smul.u32 %s32, %s31
        %s406 = smul.u32 4, %s405
        %p408 = scmp.eq.s32.totalorder %s31, 0
        // Predicated region
        $region69: #{tpu_custom_call.1} parent=51 // pred_check
          %p409 = pneg %p408
        $region70: #{tpu_custom_call.1} parent=51 // pred_check_branch
          %411 = sbr.rel (%p409) target = $region72
        $region71: #{tpu_custom_call.1} parent=51 // pred_region
          %v412 = vld [vmem:[%s352] sm:$0xff]
          %v413 = vld [vmem:[%s352 + $0x8] sm:$0xff]
          %v414 = vld [vmem:[%s352 + $0x10] sm:$0xff]
          %v415 = vld [vmem:[%s352 + $0x18] sm:$0xff]
          %v416 = vpack.c.bf16 %v413, %v412
          %v417 = vpack.c.bf16 %v415, %v414
          %v418 = vld [vmem:[#allocation13] sm:$0xff]
          %v419 = vld [vmem:[#allocation13 + $0x8] sm:$0xff]
          %v420 = vld [vmem:[#allocation13 + $0x10] sm:$0xff]
          %v421 = vld [vmem:[#allocation13 + $0x18] sm:$0xff]
          %v422 = vld [vmem:[#allocation13 + $0x20] sm:$0xff]
          %v423 = vld [vmem:[#allocation13 + $0x28] sm:$0xff]
          %v424 = vld [vmem:[#allocation13 + $0x30] sm:$0xff]
          %v425 = vld [vmem:[#allocation13 + $0x38] sm:$0xff]
          %v426 = vld [vmem:[#allocation13 + $0x40] sm:$0xff]
          %v427 = vld [vmem:[#allocation13 + $0x48] sm:$0xff]
          %v428 = vld [vmem:[#allocation13 + $0x50] sm:$0xff]
          %v429 = vld [vmem:[#allocation13 + $0x58] sm:$0xff]
          %v430 = vld [vmem:[#allocation13 + $0x60] sm:$0xff]
          %v431 = vld [vmem:[#allocation13 + $0x68] sm:$0xff]
          %v432 = vld [vmem:[#allocation13 + $0x70] sm:$0xff]
          %v433 = vld [vmem:[#allocation13 + $0x78] sm:$0xff]
          %v434 = vld [vmem:[%s3] sm:$0x3]
          %v436 = vlaneseq
          %v437 = vshrl.u32 %v436, 7
          %v438 = vsub.s32 0, %v437
          %v439 = vrot.slane %v434, %v438
          %v440 = vlaneseq
          %v441 = vshrl.u32 %v440, 7
          %v442 = vsub.s32 1, %v441
          %v443 = vrot.slane %v434, %v442
          %v462 = vunpack.c.l.b16 %v418
          %v463 = vunpack.c.h.b16 %v418
          %v464 = vunpack.c.l.b16 %v419
          %v465 = vunpack.c.h.b16 %v419
          %v466 = vunpack.c.l.b16 %v420
          %v467 = vunpack.c.h.b16 %v420
          %v468 = vunpack.c.l.b16 %v421
          %v469 = vunpack.c.h.b16 %v421
          %v470 = vunpack.c.l.b16 %v422
          %v471 = vunpack.c.h.b16 %v422
          %v472 = vunpack.c.l.b16 %v423
          %v473 = vunpack.c.h.b16 %v423
          %v474 = vunpack.c.l.b16 %v424
          %v475 = vunpack.c.h.b16 %v424
          %v476 = vunpack.c.l.b16 %v425
          %v477 = vunpack.c.h.b16 %v425
          %v478 = vunpack.c.l.b16 %v426
          %v479 = vunpack.c.h.b16 %v426
          %v480 = vunpack.c.l.b16 %v427
          %v481 = vunpack.c.h.b16 %v427
          %v482 = vunpack.c.l.b16 %v428
          %v483 = vunpack.c.h.b16 %v428
          %v484 = vunpack.c.l.b16 %v429
          %v485 = vunpack.c.h.b16 %v429
          %v486 = vunpack.c.l.b16 %v430
          %v487 = vunpack.c.h.b16 %v430
          %v488 = vunpack.c.l.b16 %v431
          %v489 = vunpack.c.h.b16 %v431
          %v490 = vunpack.c.l.b16 %v432
          %v491 = vunpack.c.h.b16 %v432
          %v492 = vunpack.c.l.b16 %v433
          %v493 = vunpack.c.h.b16 %v433
          %v494 = vpack.c.b16 %v464, %v462
          %v495 = vpack.c.b16 %v465, %v463
          %v496 = vpack.c.b16 %v468, %v466
          %v497 = vpack.c.b16 %v469, %v467
          %v498 = vpack.c.b16 %v472, %v470
          %v499 = vpack.c.b16 %v473, %v471
          %v500 = vpack.c.b16 %v476, %v474
          %v501 = vpack.c.b16 %v477, %v475
          %v502 = vpack.c.b16 %v480, %v478
          %v503 = vpack.c.b16 %v481, %v479
          %v504 = vpack.c.b16 %v484, %v482
          %v505 = vpack.c.b16 %v485, %v483
          %v506 = vpack.c.b16 %v488, %v486
          %v507 = vpack.c.b16 %v489, %v487
          %v508 = vpack.c.b16 %v492, %v490
          %v509 = vpack.c.b16 %v493, %v491
          %526 = vmatprep.subr.bf16.mxu0 %v495
          %527 = vmatpush1.bf16.msra.mxu0 %v494
          %528 = vmatprep.subr.bf16.mxu0 %v497
          %529 = vmatpush1.bf16.msra.mxu0 %v496
          %530 = vmatprep.subr.bf16.mxu0 %v499
          %531 = vmatpush1.bf16.msra.mxu0 %v498
          %532 = vmatprep.subr.bf16.mxu0 %v501
          %533 = vmatpush1.bf16.msra.mxu0 %v500
          %534 = vmatprep.subr.bf16.mxu0 %v503
          %535 = vmatpush1.bf16.msra.mxu0 %v502
          %536 = vmatprep.subr.bf16.mxu0 %v505
          %537 = vmatpush1.bf16.msra.mxu0 %v504
          %538 = vmatprep.subr.bf16.mxu0 %v507
          %539 = vmatpush1.bf16.msra.mxu0 %v506
          %540 = vmatprep.subr.bf16.mxu0 %v509
          %541 = vmatpush1.bf16.msra.mxu0 %v508
          %542 = vmatprep.subr.bf16.mxu0 0
          %543 = vmatpush1.bf16.msra.mxu0 0
          %544 = vmatprep.subr.bf16.mxu0 0
          %545 = vmatpush1.bf16.msra.mxu0 0
          %546 = vmatprep.subr.bf16.mxu0 0
          %547 = vmatpush1.bf16.msra.mxu0 0
          %548 = vmatprep.subr.bf16.mxu0 0
          %549 = vmatpush1.bf16.msra.mxu0 0
          %550 = vmatprep.subr.bf16.mxu0 0
          %551 = vmatpush1.bf16.msra.mxu0 0
          %552 = vmatprep.subr.bf16.mxu0 0
          %553 = vmatpush1.bf16.msra.mxu0 0
          %554 = vmatprep.subr.bf16.mxu0 0
          %555 = vmatpush1.bf16.msra.mxu0 0
          %556 = vmatprep.subr.bf16.mxu0 0
          %557 = vmatpush1.bf16.msra.mxu0 0
          %558 = vmatprep.mubr.bf16.mxu0 0
          %559 = vmatmul.mubr.bf16.gmra.mrb[0].mxu0 %v416
          %v560 = vpop.f32.mrb[0].mxu0
          %v561 = vadd.f32 %v439, %v560
          %v562 = vpop.f32.mrb[0].mxu0
          %v563 = vadd.f32 %v443, %v562
          %v564 = vpop.f32.mrb[0].mxu0
          %v565 = vadd.f32 %v439, %v564
          %v566 = vpop.f32.mrb[0].mxu0
          %v567 = vadd.f32 %v443, %v566
          %568 = vmatprep.mubr.bf16.mxu0 0
          %569 = vmatmul.mubr.bf16.gmra.mrb[0].mxu0 %v417
          %v570 = vpop.f32.mrb[0].mxu0
          %v571 = vadd.f32 %v439, %v570
          %v572 = vpop.f32.mrb[0].mxu0
          %v573 = vadd.f32 %v443, %v572
          %v574 = vpop.f32.mrb[0].mxu0
          %v575 = vadd.f32 %v439, %v574
          %v576 = vpop.f32.mrb[0].mxu0
          %v577 = vadd.f32 %v443, %v576
          %578 = vdwg.mxu0
          %p579 = scmp.eq.s32.totalorder %s32, 0
          // Predicated region
          $region73: #{tpu_custom_call.1} parent=71 // pred_check
            %p580 = pneg %p579
          $region74: #{tpu_custom_call.1} parent=71 // pred_check_branch
            %582 = sbr.rel (%p580) target = $region76
          $region75: #{tpu_custom_call.1} parent=71 // pred_region
            %v583 = vlaneseq
            %vm584 = vcmp.ge.s32.totalorder %v583, 0
            %vm585 = vcmp.lt.s32.totalorder %v583, 256
            %vm586 = vmand %vm584, %vm585
            %587 = vst.msk [vmem:[#allocation2] sm:$0x3] %vm586, 0.0
            %588 = vst.msk [vmem:[#allocation3] sm:$0x3] %vm586, 0.0
          $region76: #{tpu_custom_call.1} parent=71 // pred_fallthru
            _
          %v589 = vld [vmem:[#allocation2] sm:$0x3]
          %v590 = vadd.f32 %v561, %v565
          %v591 = vadd.f32 %v590, %v571
          %v592 = vadd.f32 %v591, %v575
          %v593 = vrot.slane %v592, 4
          %v594 = vadd.f32 %v592, %v593
          %v595 = vrot.slane %v594, 2
          %v596 = vadd.f32 %v594, %v595
          %v597 = vrot.slane %v596, 1
          %v598 = vadd.f32 %v596, %v597
          %v599 = vadd.f32 %v563, %v567
          %v600 = vadd.f32 %v599, %v573
          %v601 = vadd.f32 %v600, %v577
          %v602 = vrot.slane %v601, 4
          %v603 = vadd.f32 %v601, %v602
          %v604 = vrot.slane %v603, 2
          %v605 = vadd.f32 %v603, %v604
          %v606 = vrot.slane %v605, 1
          %v607 = vadd.f32 %v605, %v606
          %v610 = vcombine.low %v598, %v607
          %v612 = vunpack.c.l.s4 1966171168
          %v613 = vunpack.c.0.s8 %v612
          %v614 = vlaneseq
          %v615 = vshrl.u32 %v614, 7
          %v616 = vsub.s32 %v613, %v615
          %v617 = vrot.slane %v610, %v616
          %v619 = vunpack.c.l.s4 1966171168
          %v620 = vunpack.c.0.s8 %v619
          %v621 = vlaneseq
          %v622 = vshrl.u32 %v621, 7
          %v623 = vsub.s32 %v620, %v622
          %v624 = vrot.slane %v617, %v623
          %v626 = vadd.f32 %v589, %v624
          %v627 = vlaneseq
          %vm628 = vcmp.ge.s32.totalorder %v627, 0
          %vm629 = vcmp.lt.s32.totalorder %v627, 256
          %vm630 = vmand %vm628, %vm629
          %631 = vst.msk [vmem:[#allocation2] sm:$0x3] %vm630, %v626
          %v632 = vld [vmem:[#allocation3] sm:$0x3]
          %v633 = vmul.f32 %v561, %v561
          %v634 = vmul.f32 %v563, %v563
          %v635 = vmul.f32 %v565, %v565
          %v636 = vmul.f32 %v567, %v567
          %v637 = vmul.f32 %v571, %v571
          %v638 = vmul.f32 %v573, %v573
          %v639 = vmul.f32 %v575, %v575
          %v640 = vmul.f32 %v577, %v577
          %v641 = vadd.f32 %v633, %v635
          %v642 = vadd.f32 %v641, %v637
          %v643 = vadd.f32 %v642, %v639
          %v644 = vrot.slane %v643, 4
          %v645 = vadd.f32 %v643, %v644
          %v646 = vrot.slane %v645, 2
          %v647 = vadd.f32 %v645, %v646
          %v648 = vrot.slane %v647, 1
          %v649 = vadd.f32 %v647, %v648
          %v650 = vadd.f32 %v634, %v636
          %v651 = vadd.f32 %v650, %v638
          %v652 = vadd.f32 %v651, %v640
          %v653 = vrot.slane %v652, 4
          %v654 = vadd.f32 %v652, %v653
          %v655 = vrot.slane %v654, 2
          %v656 = vadd.f32 %v654, %v655
          %v657 = vrot.slane %v656, 1
          %v658 = vadd.f32 %v656, %v657
          %v661 = vcombine.low %v649, %v658
          %v663 = vunpack.c.l.s4 1966171168
          %v664 = vunpack.c.0.s8 %v663
          %v665 = vlaneseq
          %v666 = vshrl.u32 %v665, 7
          %v667 = vsub.s32 %v664, %v666
          %v668 = vrot.slane %v661, %v667
          %v670 = vunpack.c.l.s4 1966171168
          %v671 = vunpack.c.0.s8 %v670
          %v672 = vlaneseq
          %v673 = vshrl.u32 %v672, 7
          %v674 = vsub.s32 %v671, %v673
          %v675 = vrot.slane %v668, %v674
          %v677 = vadd.f32 %v632, %v675
          %678 = vst.msk [vmem:[#allocation3] sm:$0x3] %vm630, %v677
          %v679 = vpack.c.bf16 %v565, %v561
          %v680 = vpack.c.bf16 %v567, %v563
          %v681 = vpack.c.bf16 %v575, %v571
          %v682 = vpack.c.bf16 %v577, %v573
          %s683 = smul.u32 %s32, 4
          %s684 = smul.addr %s683, 8
          %s685 = scalar_lea.vmem [#allocation7], %s684
          %686 = vst [vmem:[%s685] sm:$0xff] %v679
          %687 = vst [vmem:[%s685 + $0x8] sm:$0xff] %v680
          %688 = vst [vmem:[%s685 + $0x10] sm:$0xff] %v681
          %689 = vst [vmem:[%s685 + $0x18] sm:$0xff] %v682
        $region72: #{tpu_custom_call.1} parent=51 // pred_fallthru
          _
        %p690 = scmp.eq.s32.totalorder %s31, 1
        // Predicated region
        $region77: #{tpu_custom_call.1} parent=51 // pred_check
          %p691 = pneg %p690
        $region78: #{tpu_custom_call.1} parent=51 // pred_check_branch
          %693 = sbr.rel (%p691) target = $region80
        $region79: #{tpu_custom_call.1} parent=51 // pred_region
          %p694 = scmp.eq.s32.totalorder %s32, 0
          // Predicated region
          $region81: #{tpu_custom_call.1} parent=79 // pred_check
            %p695 = pneg %p694
          $region82: #{tpu_custom_call.1} parent=79 // pred_check_branch
            %697 = sbr.rel (%p695) target = $region84
          $region83: #{tpu_custom_call.1} parent=79 // pred_region
            %v698 = vld [vmem:[#allocation2] sm:$0x3]
            %v699 = vmul.f32 %v698, 0.015625
            %v700 = vld [vmem:[#allocation3] sm:$0x3]
            %v701 = vmul.f32 %v700, 0.015625
            %v702 = vmul.f32 %v699, %v699
            %v703 = vsub.f32 %v701, %v702
            %v704 = vld [vmem:[%s4] sm:$0x3]
            %v705 = vadd.f32 %v703, 1e-05
            %v706 = vrsqrt.pop %v705
            %v707 = vmul.f32 %v704, %v706
            %v708 = vlaneseq
            %vm709 = vcmp.ge.s32.totalorder %v708, 0
            %vm710 = vcmp.lt.s32.totalorder %v708, 256
            %vm711 = vmand %vm709, %vm710
            %712 = vst.msk [vmem:[#allocation4] sm:$0x3] %vm711, %v707
            %v713 = vld [vmem:[%s5] sm:$0x3]
            %v714 = vmul.f32 %v699, %v707
            %v715 = vsub.f32 %v713, %v714
            %716 = vst.msk [vmem:[#allocation5] sm:$0x3] %vm711, %v715
            %vm717 = vcmask 0
            %718 = vst.msk [vmem:[#allocation6] sm:$0x1] %vm717, 0.0
          $region84: #{tpu_custom_call.1} parent=79 // pred_fallthru
            _
          %s719 = smul.u32 %s32, 4
          %s720 = smul.addr %s719, 8
          %s721 = scalar_lea.vmem [#allocation7], %s720
          %v722 = vld [vmem:[%s721] sm:$0xff]
          %v723 = vld [vmem:[%s721 + $0x8] sm:$0xff]
          %v724 = vld [vmem:[%s721 + $0x10] sm:$0xff]
          %v725 = vld [vmem:[%s721 + $0x18] sm:$0xff]
          %v726 = vunpack.c.l.bf16 %v722
          %v727 = vunpack.c.l.bf16 %v723
          %v728 = vunpack.c.h.bf16 %v722
          %v729 = vunpack.c.h.bf16 %v723
          %v730 = vunpack.c.l.bf16 %v724
          %v731 = vunpack.c.l.bf16 %v725
          %v732 = vunpack.c.h.bf16 %v724
          %v733 = vunpack.c.h.bf16 %v725
          %v734 = vld [vmem:[#allocation4] sm:$0x3]
          %v736 = vlaneseq
          %v737 = vshrl.u32 %v736, 7
          %v738 = vsub.s32 0, %v737
          %v739 = vrot.slane %v734, %v738
          %v740 = vlaneseq
          %v741 = vshrl.u32 %v740, 7
          %v742 = vsub.s32 1, %v741
          %v743 = vrot.slane %v734, %v742
          %v746 = vmul.f32 %v726, %v739
          %v747 = vmul.f32 %v727, %v743
          %v748 = vmul.f32 %v728, %v739
          %v749 = vmul.f32 %v729, %v743
          %v750 = vmul.f32 %v730, %v739
          %v751 = vmul.f32 %v731, %v743
          %v752 = vmul.f32 %v732, %v739
          %v753 = vmul.f32 %v733, %v743
          %v754 = vld [vmem:[#allocation5] sm:$0x3]
          %v756 = vlaneseq
          %v757 = vshrl.u32 %v756, 7
          %v758 = vsub.s32 0, %v757
          %v759 = vrot.slane %v754, %v758
          %v760 = vlaneseq
          %v761 = vshrl.u32 %v760, 7
          %v762 = vsub.s32 1, %v761
          %v763 = vrot.slane %v754, %v762
          %v766 = vadd.f32 %v746, %v759
          %v767 = vadd.f32 %v747, %v763
          %v768 = vadd.f32 %v748, %v759
          %v769 = vadd.f32 %v749, %v763
          %v770 = vadd.f32 %v750, %v759
          %v771 = vadd.f32 %v751, %v763
          %v772 = vadd.f32 %v752, %v759
          %v773 = vadd.f32 %v753, %v763
          %v774 = vmax.f32 %v766, 0.0
          %v775 = vmax.f32 %v767, 0.0
          %v776 = vmax.f32 %v768, 0.0
          %v777 = vmax.f32 %v769, 0.0
          %v778 = vmax.f32 %v770, 0.0
          %v779 = vmax.f32 %v771, 0.0
          %v780 = vmax.f32 %v772, 0.0
          %v781 = vmax.f32 %v773, 0.0
          %v782 = vpack.c.bf16 %v776, %v774
          %v783 = vpack.c.bf16 %v777, %v775
          %v784 = vpack.c.bf16 %v780, %v778
          %v785 = vpack.c.bf16 %v781, %v779
          %v786 = vld [vmem:[#allocation14] sm:$0xf]
          %v787 = vld [vmem:[#allocation14 + $0x4] sm:$0xf]
          %v788 = vld [vmem:[#allocation14 + $0x8] sm:$0xf]
          %v789 = vld [vmem:[#allocation14 + $0xc] sm:$0xf]
          %v790 = vld [vmem:[#allocation14 + $0x10] sm:$0xf]
          %v791 = vld [vmem:[#allocation14 + $0x14] sm:$0xf]
          %v792 = vld [vmem:[#allocation14 + $0x18] sm:$0xf]
          %v793 = vld [vmem:[#allocation14 + $0x1c] sm:$0xf]
          %v794 = vld [vmem:[#allocation14 + $0x20] sm:$0xf]
          %v795 = vld [vmem:[#allocation14 + $0x24] sm:$0xf]
          %v796 = vld [vmem:[#allocation14 + $0x28] sm:$0xf]
          %v797 = vld [vmem:[#allocation14 + $0x2c] sm:$0xf]
          %v798 = vld [vmem:[#allocation14 + $0x30] sm:$0xf]
          %v799 = vld [vmem:[#allocation14 + $0x34] sm:$0xf]
          %v800 = vld [vmem:[#allocation14 + $0x38] sm:$0xf]
          %v801 = vld [vmem:[#allocation14 + $0x3c] sm:$0xf]
          %v802 = vld [vmem:[#allocation14 + $0x40] sm:$0xf]
          %v803 = vld [vmem:[#allocation14 + $0x44] sm:$0xf]
          %v804 = vld [vmem:[#allocation14 + $0x48] sm:$0xf]
          %v805 = vld [vmem:[#allocation14 + $0x4c] sm:$0xf]
          %v806 = vld [vmem:[#allocation14 + $0x50] sm:$0xf]
          %v807 = vld [vmem:[#allocation14 + $0x54] sm:$0xf]
          %v808 = vld [vmem:[#allocation14 + $0x58] sm:$0xf]
          %v809 = vld [vmem:[#allocation14 + $0x5c] sm:$0xf]
          %v810 = vld [vmem:[#allocation14 + $0x60] sm:$0xf]
          %v811 = vld [vmem:[#allocation14 + $0x64] sm:$0xf]
          %v812 = vld [vmem:[#allocation14 + $0x68] sm:$0xf]
          %v813 = vld [vmem:[#allocation14 + $0x6c] sm:$0xf]
          %v814 = vld [vmem:[#allocation14 + $0x70] sm:$0xf]
          %v815 = vld [vmem:[#allocation14 + $0x74] sm:$0xf]
          %v816 = vld [vmem:[#allocation14 + $0x78] sm:$0xf]
          %v817 = vld [vmem:[#allocation14 + $0x7c] sm:$0xf]
          %v818 = vld [vmem:[%s7] sm:$0x1]
          %v820 = vlaneseq
          %v821 = vshrl.u32 %v820, 7
          %v822 = vsub.s32 0, %v821
          %v823 = vrot.slane %v818, %v822
          %v857 = vunpack.c.l.b16 %v786
          %v858 = vunpack.c.l.b16 %v787
          %v859 = vunpack.c.l.b16 %v788
          %v860 = vunpack.c.l.b16 %v789
          %v861 = vunpack.c.l.b16 %v790
          %v862 = vunpack.c.l.b16 %v791
          %v863 = vunpack.c.l.b16 %v792
          %v864 = vunpack.c.l.b16 %v793
          %v865 = vunpack.c.l.b16 %v794
          %v866 = vunpack.c.l.b16 %v795
          %v867 = vunpack.c.l.b16 %v796
          %v868 = vunpack.c.l.b16 %v797
          %v869 = vunpack.c.l.b16 %v798
          %v870 = vunpack.c.l.b16 %v799
          %v871 = vunpack.c.l.b16 %v800
          %v872 = vunpack.c.l.b16 %v801
          %v873 = vunpack.c.l.b16 %v802
          %v874 = vunpack.c.l.b16 %v803
          %v875 = vunpack.c.l.b16 %v804
          %v876 = vunpack.c.l.b16 %v805
          %v877 = vunpack.c.l.b16 %v806
          %v878 = vunpack.c.l.b16 %v807
          %v879 = vunpack.c.l.b16 %v808
          %v880 = vunpack.c.l.b16 %v809
          %v881 = vunpack.c.l.b16 %v810
          %v882 = vunpack.c.l.b16 %v811
          %v883 = vunpack.c.l.b16 %v812
          %v884 = vunpack.c.l.b16 %v813
          %v885 = vunpack.c.l.b16 %v814
          %v886 = vunpack.c.l.b16 %v815
          %v887 = vunpack.c.l.b16 %v816
          %v888 = vunpack.c.l.b16 %v817
          %v889 = vpack.c.b16 %v858, %v857
          %v890 = vpack.c.b16 %v860, %v859
          %v891 = vpack.c.b16 %v862, %v861
          %v892 = vpack.c.b16 %v864, %v863
          %v893 = vpack.c.b16 %v866, %v865
          %v894 = vpack.c.b16 %v868, %v867
          %v895 = vpack.c.b16 %v870, %v869
          %v896 = vpack.c.b16 %v872, %v871
          %v897 = vpack.c.b16 %v874, %v873
          %v898 = vpack.c.b16 %v876, %v875
          %v899 = vpack.c.b16 %v878, %v877
          %v900 = vpack.c.b16 %v880, %v879
          %v901 = vpack.c.b16 %v882, %v881
          %v902 = vpack.c.b16 %v884, %v883
          %v903 = vpack.c.b16 %v886, %v885
          %v904 = vpack.c.b16 %v888, %v887
          %921 = vmatprep.subr.bf16.mxu0 0
          %922 = vmatpush1.bf16.msra.mxu0 %v889
          %923 = vmatprep.subr.bf16.mxu0 0
          %924 = vmatpush1.bf16.msra.mxu0 %v890
          %925 = vmatprep.subr.bf16.mxu0 0
          %926 = vmatpush1.bf16.msra.mxu0 %v891
          %927 = vmatprep.subr.bf16.mxu0 0
          %928 = vmatpush1.bf16.msra.mxu0 %v892
          %929 = vmatprep.subr.bf16.mxu0 0
          %930 = vmatpush1.bf16.msra.mxu0 %v893
          %931 = vmatprep.subr.bf16.mxu0 0
          %932 = vmatpush1.bf16.msra.mxu0 %v894
          %933 = vmatprep.subr.bf16.mxu0 0
          %934 = vmatpush1.bf16.msra.mxu0 %v895
          %935 = vmatprep.subr.bf16.mxu0 0
          %936 = vmatpush1.bf16.msra.mxu0 %v896
          %937 = vmatprep.subr.bf16.mxu0 0
          %938 = vmatpush1.bf16.msra.mxu0 %v897
          %939 = vmatprep.subr.bf16.mxu0 0
          %940 = vmatpush1.bf16.msra.mxu0 %v898
          %941 = vmatprep.subr.bf16.mxu0 0
          %942 = vmatpush1.bf16.msra.mxu0 %v899
          %943 = vmatprep.subr.bf16.mxu0 0
          %944 = vmatpush1.bf16.msra.mxu0 %v900
          %945 = vmatprep.subr.bf16.mxu0 0
          %946 = vmatpush1.bf16.msra.mxu0 %v901
          %947 = vmatprep.subr.bf16.mxu0 0
          %948 = vmatpush1.bf16.msra.mxu0 %v902
          %949 = vmatprep.subr.bf16.mxu0 0
          %950 = vmatpush1.bf16.msra.mxu0 %v903
          %951 = vmatprep.subr.bf16.mxu0 0
          %952 = vmatpush1.bf16.msra.mxu0 %v904
          %953 = vmatprep.mubr.bf16.mxu0 %v783
          %954 = vmatmul.mubr.bf16.gmra.mrb[0].mxu0 %v782
          %v955 = vpop.f32.mrb[0].mxu0
          %v956 = vadd.f32 %v823, %v955
          %v957 = vpop.f32.mrb[0].mxu0
          %v958 = vpop.f32.mrb[0].mxu0
          %v959 = vadd.f32 %v823, %v958
          %v960 = vpop.f32.mrb[0].mxu0
          %961 = vmatprep.mubr.bf16.mxu0 %v785
          %962 = vmatmul.mubr.bf16.gmra.mrb[0].mxu0 %v784
          %v963 = vpop.f32.mrb[0].mxu0
          %v964 = vadd.f32 %v823, %v963
          %v965 = vpop.f32.mrb[0].mxu0
          %v966 = vpop.f32.mrb[0].mxu0
          %v967 = vadd.f32 %v823, %v966
          %v968 = vpop.f32.mrb[0].mxu0
          %969 = vdwg.mxu0
          %v970 = vld [vmem:[%s361] sm:$0xff]
          %v971 = vld [vmem:[%s361 + $0x8] sm:$0xff]
          %v972 = vld [vmem:[%s361 + $0x10] sm:$0xff]
          %v973 = vld [vmem:[%s361 + $0x18] sm:$0xff]
          %v974 = vmul.f32 %v956, %v970
          %v975 = vmul.f32 %v959, %v971
          %v976 = vmul.f32 %v964, %v972
          %v977 = vmul.f32 %v967, %v973
          %978 = vadd.xlane.f32.xlu0 %v974
          %v979 = vpop.xlane.xlu0 %978
          %980 = vadd.xlane.f32.xlu0 %v975
          %v981 = vpop.xlane.xlu0 %980
          %982 = vadd.xlane.f32.xlu0 %v976
          %v983 = vpop.xlane.xlu0 %982
          %984 = vadd.xlane.f32.xlu0 %v977
          %v985 = vpop.xlane.xlu0 %984
          %v986 = vmul.f32 %v956, %v956
          %v987 = vmul.f32 %v959, %v959
          %v988 = vmul.f32 %v964, %v964
          %v989 = vmul.f32 %v967, %v967
          %990 = vadd.xlane.f32.xlu0 %v986
          %v991 = vpop.xlane.xlu0 %990
          %992 = vadd.xlane.f32.xlu0 %v987
          %v993 = vpop.xlane.xlu0 %992
          %994 = vadd.xlane.f32.xlu0 %v988
          %v995 = vpop.xlane.xlu0 %994
          %996 = vadd.xlane.f32.xlu0 %v989
          %v997 = vpop.xlane.xlu0 %996
          %v998 = vmul.f32 %v970, %v970
          %v999 = vmul.f32 %v971, %v971
          %v1000 = vmul.f32 %v972, %v972
          %v1001 = vmul.f32 %v973, %v973
          %1002 = vadd.xlane.f32.xlu0 %v998
          %v1003 = vpop.xlane.xlu0 %1002
          %1004 = vadd.xlane.f32.xlu0 %v999
          %v1005 = vpop.xlane.xlu0 %1004
          %1006 = vadd.xlane.f32.xlu0 %v1000
          %v1007 = vpop.xlane.xlu0 %1006
          %1008 = vadd.xlane.f32.xlu0 %v1001
          %v1009 = vpop.xlane.xlu0 %1008
          %v1010 = vmax.f32 %v991, 1e-24
          %v1011 = vmax.f32 %v993, 1e-24
          %v1012 = vmax.f32 %v995, 1e-24
          %v1013 = vmax.f32 %v997, 1e-24
          %v1014 = vrsqrt.pop %v1010
          %v1015 = vrsqrt.pop %v1011
          %v1016 = vrsqrt.pop %v1012
          %v1017 = vrsqrt.pop %v1013
          %v1018 = vmul.f32 %v979, %v1014
          %v1019 = vmul.f32 %v981, %v1015
          %v1020 = vmul.f32 %v983, %v1016
          %v1021 = vmul.f32 %v985, %v1017
          %v1022 = vmax.f32 %v1003, 1e-24
          %v1023 = vmax.f32 %v1005, 1e-24
          %v1024 = vmax.f32 %v1007, 1e-24
          %v1025 = vmax.f32 %v1009, 1e-24
          %v1026 = vrsqrt.pop %v1022
          %v1027 = vrsqrt.pop %v1023
          %v1028 = vrsqrt.pop %v1024
          %v1029 = vrsqrt.pop %v1025
          %v1030 = vmul.f32 %v1018, %v1026
          %v1031 = vmul.f32 %v1019, %v1027
          %v1032 = vmul.f32 %v1020, %v1028
          %v1033 = vmul.f32 %v1021, %v1029
          %v1034 = vld [vmem:[#allocation6] sm:$0x1]
          %vm1035 = vcmask 7168
          %v1036 = vsel %vm1035, %v1030, 0.0
          %v1037 = vsel %vm1035, %v1031, 0.0
          %v1038 = vadd.f32 %v1036, %v1037
          %v1039 = vsel %vm1035, %v1032, 0.0
          %v1040 = vadd.f32 %v1038, %v1039
          %v1041 = vsel %vm1035, %v1033, 0.0
          %v1042 = vadd.f32 %v1040, %v1041
          %1043 = vadd.xlane.f32.xlu0 %v1042
          %v1044 = vpop.xlane.xlu0 %1043
          %v1045 = vrot.slane %v1044, 4
          %v1046 = vadd.f32 %v1044, %v1045
          %v1047 = vrot.slane %v1046, 2
          %v1048 = vadd.f32 %v1046, %v1047
          %v1049 = vrot.slane %v1048, 1
          %v1050 = vadd.f32 %v1048, %v1049
          %s1051 = vtos %v1050
          %v1052 = vstv %s1051
          %v1053 = vadd.f32 %v1034, %v1052
          %vm1054 = vcmask 0
          %1055 = vst.msk [vmem:[#allocation6] sm:$0x1] %vm1054, %v1053
          %p1056 = scmp.eq.s32.totalorder %s32, 1
          // Predicated region
          $region85: #{tpu_custom_call.1} parent=79 // pred_check
            %p1057 = pneg %p1056
          $region86: #{tpu_custom_call.1} parent=79 // pred_check_branch
            %1059 = sbr.rel (%p1057) target = $region88
          $region87: #{tpu_custom_call.1} parent=79 // pred_region
            %v1060 = vld [vmem:[#allocation6] sm:$0x1]
            %v1061 = vmul.f32 %v1060, 0.015625
            %v1062 = vsub.f32 1.0, %v1061
            %v1063 = vmul.f32 %v1062, 2.0
            %1064 = vst.msk [vmem:[#allocation16] sm:$0x1] %vm1054, %v1063
          $region88: #{tpu_custom_call.1} parent=79 // pred_fallthru
            _
        $region80: #{tpu_custom_call.1} parent=51 // pred_fallthru
          _
        // Predicated region
        $region89: #{tpu_custom_call.1} parent=51 // pred_check
          %p1065 = pneg %p236
        $region90: #{tpu_custom_call.1} parent=51 // pred_check_branch
          %1067 = sbr.rel (%p1065) target = $region92
        $region91: #{tpu_custom_call.1} parent=51 // pred_region
          %s1069 = ssub.s32 16, 16
          %1070 = vsyncadd [#allocation10], %s1069
          %s1072 = sshll.u32 [#allocation16], 4
          %s1073 = int_to_ptr.vmem [resolvable:$true] %s1072
          %1075 = dma.vmem_to_hbm [thread:$0]  %s1073, 16, %s8, [#allocation10]
        $region92: #{tpu_custom_call.1} parent=51 // pred_fallthru
          _
        // Predicated region
        $region93: #{tpu_custom_call.1} parent=51 // pred_check
          %p1076 = pneg %p236
        $region94: #{tpu_custom_call.1} parent=51 // pred_check_branch
          %1078 = sbr.rel (%p1076) target = $region96
        $region95: #{tpu_custom_call.1} parent=51 // pred_region
          %1079 = dma.done [#allocation10], 16
        $region96: #{tpu_custom_call.1} parent=51 // pred_fallthru
          _
      $region52: #{tpu_custom_call.1} parent=5 // pred_fallthru
        _
      %p1080 = scmp.le.s32.totalorder 2, %s22
      // Predicated region
      $region97: #{tpu_custom_call.1} parent=5 // pred_check
        %p1081 = pneg %p1080
      $region98: #{tpu_custom_call.1} parent=5 // pred_check_branch
        %1083 = sbr.rel (%p1081) target = $region100
      $region99: #{tpu_custom_call.1} parent=5 // pred_region
        %s1084 = ssub.s32 %s22, 2
      $region100: #{tpu_custom_call.1} parent=5 // pred_fallthru
        _
    $region6: #{tpu_custom_call.1} parent=1 // loop_footer
      %s26 = sadd.s32 1, %s22
    $region7: #{tpu_custom_call.1} parent=1 // loop_footer_branch
      %21 = sbr.rel target = $region3
    $region8: #{tpu_custom_call.1} parent=1 // loop_exit
      _
    %1085 = vsyncpa [#allocation9], 1
    %s1086 = scalar_lea.sflag [#allocation9], 1
    %1087 = vsyncpa %s1086, 1
    %1088 = vsyncpa [#allocation12], 1
    %s1089 = scalar_lea.sflag [#allocation12], 1
    %1090 = vsyncpa %s1089, 1
    %1091 = vsyncpa [#allocation15], 1
    %1092 = vsyncpa [#allocation10], 1
    %s1093 = scalar_lea.sflag [#allocation10], 1
    %1094 = vsyncpa %s1093, 1

// kernel: tpu_custom_call.1
$region0: #{tpu_custom_call.1}
  #allocation0 [shape = 'u32[]', space=smem, size = 0x4, offset = 0x4, fixed_abs, tag = 'smem constant byte address 0x4 - core index']
  #allocation1 [shape = 'u32[144,128]{1,0:T(1,128)}', space=vmem, size = 0x12000, scoped, tag = 'internal scratch']
  #allocation2 [shape = 'f32[1,256]{1,0:T(1,128)}', space=vmem, size = 0x400, scoped, tag = 'scratch operand']
  #allocation3 [shape = 'f32[1,256]{1,0:T(1,128)}', space=vmem, size = 0x400, scoped, tag = 'scratch operand']
  #allocation4 [shape = 'f32[1,256]{1,0:T(1,128)}', space=vmem, size = 0x400, scoped, tag = 'scratch operand']
  #allocation5 [shape = 'f32[1,256]{1,0:T(1,128)}', space=vmem, size = 0x400, scoped, tag = 'scratch operand']
  #allocation6 [shape = 'f32[1,1]{1,0:T(1,128)}', space=vmem, size = 0x200, scoped, tag = 'scratch operand']
  #allocation7 [shape = 'bf16[2,32,256]{2,1,0:T(16,128)(2,1)}', space=vmem, size = 0x8000, scoped, tag = 'scratch operand']
  %s0 = inlined_call_operand.hbm [shape: f32[64,128], index: 0, kind: input, shape index: {}]
  %s1 = inlined_call_operand.hbm [shape: f32[64,128], index: 1, kind: input, shape index: {}]
  %s2 = inlined_call_operand.hbm [shape: bf16[128,256], index: 2, kind: input, shape index: {}]
  %s3 = inlined_call_operand.vmem [shape: f32[1,256], index: 3, kind: input, shape index: {}]
  %s4 = inlined_call_operand.vmem [shape: f32[1,256], index: 4, kind: input, shape index: {}]
  %s5 = inlined_call_operand.vmem [shape: f32[1,256], index: 5, kind: input, shape index: {}]
  %s6 = inlined_call_operand.hbm [shape: bf16[256,128], index: 6, kind: input, shape index: {}]
  %s7 = inlined_call_operand.vmem [shape: f32[1,128], index: 7, kind: input, shape index: {}]
  %s8 = inlined_call_operand.hbm [shape: f32[1,1], index: 8, kind: output, shape index: {}]
  %s9 = sld [smem:[#allocation0]]
  $region101: #{tpu_custom_call.1} parent=0
    _
  %s11 = ssub.s32 1, %s9
  %s12 = scalar_select 0, %s11, %s9
  $region1: #{tpu_custom_call.1} parent=0
    #allocation8 [shape = 'u8[32768]{0}', space=vmem, size = 0x8000, scoped, tag = 'input window, operand 0']
    #allocation9 [shape = 's32[2]{0}', space=sflag, size = 0x8, scoped, tag = 'scoped memory for tpu_custom_call.1']
    #allocation10 [shape = 's32[2]{0}', space=sflag, size = 0x8, scoped, tag = 'scoped memory for tpu_custom_call.1']
    #allocation11 [shape = 'u8[32768]{0}', space=vmem, size = 0x8000, scoped, tag = 'input window, operand 1']
    #allocation12 [shape = 's32[2]{0}', space=sflag, size = 0x8, scoped, tag = 'scoped memory for tpu_custom_call.1']
    #allocation13 [shape = 'u8[65536]{0}', space=vmem, size = 0x10000, scoped, tag = 'input window, operand 2, single buffered']
    #allocation14 [shape = 'u8[65536]{0}', space=vmem, size = 0x10000, scoped, tag = 'input window, operand 6, single buffered']
    #allocation15 [shape = 's32[1]{0}', space=sflag, size = 0x4, scoped, tag = 'scoped memory for tpu_custom_call.1']
    #allocation16 [shape = 'u8[512]{0}', space=vmem, size = 0x400, scoped, tag = 'output window, operand 0, single buffered']
    %13 = vsyncpa [#allocation9], 0
    %s14 = scalar_lea.sflag [#allocation9], 1
    %15 = vsyncpa %s14, 0
    %16 = vsyncpa [#allocation12], 0
    %s17 = scalar_lea.sflag [#allocation12], 1
    %18 = vsyncpa %s17, 0
    %19 = vsyncpa [#allocation15], 0
    %20 = vsyncpa [#allocation10], 0
    loop: start=0, step=1, limit=6
    $region2: #{tpu_custom_call.1} parent=1 // loop_pre_header
      _
    $region3: #{tpu_custom_call.1} parent=1 // loop_header
      %s22 = sphi 0, %s26
      %p23 = scmp.ge.s32.totalorder %s22, 6
      %s29 = sphi 0, %s41
      %s30 = sphi 0, %s37
      %s31 = sphi 0, %s29
      %s32 = sphi 0, %s30
      %s33 = sphi 0, %s31
      %s34 = sphi 0, %s32
      %s48 = sphi 0, %s50
      %s51 = sphi 0, %s48
      %s52 = sphi 0, %s51
      %s68 = sphi 0, %s52
      %s76 = sphi 0, %s78
      %s79 = sphi 0, %s76
      %s80 = sphi 0, %s79
      %s96 = sphi 0, %s80
      %s100 = sphi 0, %s100
      %s102 = sphi 0, %s100
      %s103 = sphi 0, %s102
      %s117 = sphi 0, %s103
      %s121 = sphi 0, %s121
      %s123 = sphi 0, %s121
      %s124 = sphi 0, %s123
      %s138 = sphi 0, %s124
      %s142 = sphi 0, %s142
      %s144 = sphi 0, %s142
      %s145 = sphi 0, %s144
      %s159 = sphi 0, %s145
      %s163 = sphi 0, %s163
      %s165 = sphi 0, %s163
      %s166 = sphi 0, %s165
      %s180 = sphi 0, %s166
      %s184 = sphi 0, %s184
      %s186 = sphi 0, %s184
      %s187 = sphi 0, %s186
      %s201 = sphi 0, %s187
      %s205 = sphi 0, %s205
      %s207 = sphi 0, %s205
      %s208 = sphi 0, %s207
      %s222 = sphi 0, %s208
      %s226 = sphi 0, %s226
      %s228 = sphi 0, %s226
      %s229 = sphi 0, %s228
      %s243 = sphi 0, %s229
    $region4: #{tpu_custom_call.1} parent=1 // loop_header_branch
      %25 = sbr.rel (%p23) target = $region8
    $region5: #{tpu_custom_call.1} parent=1 // loop_body
      %s27 = ssub.s32 %s22, 1
      %s28 = ssub.s32 %s22, 2
      %s35 = sadd.s32 1, %s30
      %p36 = scmp.ge.s32.totalorder %s35, 2
      %s37 = scalar_select %p36, 0, %s35
      %s38 = sadd.s32 1, %s29
      %s39 = scalar_select %p36, %s38, %s29
      %p40 = scmp.ge.s32.totalorder %s39, 2
      %s41 = scalar_select %p40, 0, %s39
      %s42 = ssub.s32 1, %s29
      %s43 = smul.u32 %s30, %s42
      %s44 = ssub.s32 1, %s41
      %s45 = smul.u32 %s37, %s44
      %s46 = ssub.s32 %s43, %s45
      %p47 = scmp.eq.s32.totalorder %s46, 0
      %s49 = sadd.s32 %s48, 1
      %s50 = scalar_select %p47, %s48, %s49
      %p53 = pneg %p47
      %p54 = scmp.eq.s32.totalorder %s22, 3
      %p55 = por %p53, %p54
      %p56 = scmp.ne.s32.totalorder %s48, %s51
      %p57 = scmp.eq.s32.totalorder %s22, 0
      %p58 = por %p56, %p57
      %p59 = scmp.ne.s32.totalorder %s48, %s51
      %p60 = scmp.eq.s32.totalorder %s27, 3
      %p61 = por %p59, %p60
      %p62 = scmp.ne.s32.totalorder %s51, %s52
      %p63 = scmp.eq.s32.totalorder %s27, 0
      %p64 = por %p62, %p63
      %p65 = scmp.ne.s32.totalorder %s51, %s52
      %p66 = scmp.eq.s32.totalorder %s28, 3
      %p67 = por %p65, %p66
      %p69 = scmp.ne.s32.totalorder %s52, %s68
      %p70 = scmp.eq.s32.totalorder %s28, 0
      %p71 = por %p69, %p70
      %s72 = smul.u32 %s30, %s29
      %s73 = smul.u32 %s37, %s41
      %s74 = ssub.s32 %s72, %s73
      %p75 = scmp.eq.s32.totalorder %s74, 0
      %s77 = sadd.s32 %s76, 1
      %s78 = scalar_select %p75, %s76, %s77
      %p81 = pneg %p75
      %p82 = scmp.eq.s32.totalorder %s22, 3
      %p83 = por %p81, %p82
      %p84 = scmp.ne.s32.totalorder %s76, %s79
      %p85 = scmp.eq.s32.totalorder %s22, 0
      %p86 = por %p84, %p85
      %p87 = scmp.ne.s32.totalorder %s76, %s79
      %p88 = scmp.eq.s32.totalorder %s27, 3
      %p89 = por %p87, %p88
      %p90 = scmp.ne.s32.totalorder %s79, %s80
      %p91 = scmp.eq.s32.totalorder %s27, 0
      %p92 = por %p90, %p91
      %p93 = scmp.ne.s32.totalorder %s79, %s80
      %p94 = scmp.eq.s32.totalorder %s28, 3
      %p95 = por %p93, %p94
      %p97 = scmp.ne.s32.totalorder %s80, %s96
      %p98 = scmp.eq.s32.totalorder %s28, 0
      %p99 = por %p97, %p98
      %s101 = sadd.s32 %s100, 1
      %p104 = scmp.eq.s32.totalorder %s22, 3
      %p105 = scmp.ne.s32.totalorder %s100, %s102
      %p106 = scmp.eq.s32.totalorder %s22, 0
      %p107 = por %p105, %p106
      %p108 = scmp.ne.s32.totalorder %s100, %s102
      %p109 = scmp.eq.s32.totalorder %s27, 3
      %p110 = por %p108, %p109
      %p111 = scmp.ne.s32.totalorder %s102, %s103
      %p112 = scmp.eq.s32.totalorder %s27, 0
      %p113 = por %p111, %p112
      %p114 = scmp.ne.s32.totalorder %s102, %s103
      %p115 = scmp.eq.s32.totalorder %s28, 3
      %p116 = por %p114, %p115
      %p118 = scmp.ne.s32.totalorder %s103, %s117
      %p119 = scmp.eq.s32.totalorder %s28, 0
      %p120 = por %p118, %p119
      %s122 = sadd.s32 %s121, 1
      %p125 = scmp.eq.s32.totalorder %s22, 3
      %p126 = scmp.ne.s32.totalorder %s121, %s123
      %p127 = scmp.eq.s32.totalorder %s22, 0
      %p128 = por %p126, %p127
      %p129 = scmp.ne.s32.totalorder %s121, %s123
      %p130 = scmp.eq.s32.totalorder %s27, 3
      %p131 = por %p129, %p130
      %p132 = scmp.ne.s32.totalorder %s123, %s124
      %p133 = scmp.eq.s32.totalorder %s27, 0
      %p134 = por %p132, %p133
      %p135 = scmp.ne.s32.totalorder %s123, %s124
      %p136 = scmp.eq.s32.totalorder %s28, 3
      %p137 = por %p135, %p136
      %p139 = scmp.ne.s32.totalorder %s124, %s138
      %p140 = scmp.eq.s32.totalorder %s28, 0
      %p141 = por %p139, %p140
      %s143 = sadd.s32 %s142, 1
      %p146 = scmp.eq.s32.totalorder %s22, 3
      %p147 = scmp.ne.s32.totalorder %s142, %s144
      %p148 = scmp.eq.s32.totalorder %s22, 0
      %p149 = por %p147, %p148
      %p150 = scmp.ne.s32.totalorder %s142, %s144
      %p151 = scmp.eq.s32.totalorder %s27, 3
      %p152 = por %p150, %p151
      %p153 = scmp.ne.s32.totalorder %s144, %s145
      %p154 = scmp.eq.s32.totalorder %s27, 0
      %p155 = por %p153, %p154
      %p156 = scmp.ne.s32.totalorder %s144, %s145
      %p157 = scmp.eq.s32.totalorder %s28, 3
      %p158 = por %p156, %p157
      %p160 = scmp.ne.s32.totalorder %s145, %s159
      %p161 = scmp.eq.s32.totalorder %s28, 0
      %p162 = por %p160, %p161
      %s164 = sadd.s32 %s163, 1
      %p167 = scmp.eq.s32.totalorder %s22, 3
      %p168 = scmp.ne.s32.totalorder %s163, %s165
      %p169 = scmp.eq.s32.totalorder %s22, 0
      %p170 = por %p168, %p169
      %p171 = scmp.ne.s32.totalorder %s163, %s165
      %p172 = scmp.eq.s32.totalorder %s27, 3
      %p173 = por %p171, %p172
      %p174 = scmp.ne.s32.totalorder %s165, %s166
      %p175 = scmp.eq.s32.totalorder %s27, 0
      %p176 = por %p174, %p175
      %p177 = scmp.ne.s32.totalorder %s165, %s166
      %p178 = scmp.eq.s32.totalorder %s28, 3
      %p179 = por %p177, %p178
      %p181 = scmp.ne.s32.totalorder %s166, %s180
      %p182 = scmp.eq.s32.totalorder %s28, 0
      %p183 = por %p181, %p182
      %s185 = sadd.s32 %s184, 1
      %p188 = scmp.eq.s32.totalorder %s22, 3
      %p189 = scmp.ne.s32.totalorder %s184, %s186
      %p190 = scmp.eq.s32.totalorder %s22, 0
      %p191 = por %p189, %p190
      %p192 = scmp.ne.s32.totalorder %s184, %s186
      %p193 = scmp.eq.s32.totalorder %s27, 3
      %p194 = por %p192, %p193
      %p195 = scmp.ne.s32.totalorder %s186, %s187
      %p196 = scmp.eq.s32.totalorder %s27, 0
      %p197 = por %p195, %p196
      %p198 = scmp.ne.s32.totalorder %s186, %s187
      %p199 = scmp.eq.s32.totalorder %s28, 3
      %p200 = por %p198, %p199
      %p202 = scmp.ne.s32.totalorder %s187, %s201
      %p203 = scmp.eq.s32.totalorder %s28, 0
      %p204 = por %p202, %p203
      %s206 = sadd.s32 %s205, 1
      %p209 = scmp.eq.s32.totalorder %s22, 3
      %p210 = scmp.ne.s32.totalorder %s205, %s207
      %p211 = scmp.eq.s32.totalorder %s22, 0
      %p212 = por %p210, %p211
      %p213 = scmp.ne.s32.totalorder %s205, %s207
      %p214 = scmp.eq.s32.totalorder %s27, 3
      %p215 = por %p213, %p214
      %p216 = scmp.ne.s32.totalorder %s207, %s208
      %p217 = scmp.eq.s32.totalorder %s27, 0
      %p218 = por %p216, %p217
      %p219 = scmp.ne.s32.totalorder %s207, %s208
      %p220 = scmp.eq.s32.totalorder %s28, 3
      %p221 = por %p219, %p220
      %p223 = scmp.ne.s32.totalorder %s208, %s222
      %p224 = scmp.eq.s32.totalorder %s28, 0
      %p225 = por %p223, %p224
      %s227 = sadd.s32 %s226, 1
      %p230 = scmp.eq.s32.totalorder %s22, 3
      %p231 = scmp.ne.s32.totalorder %s226, %s228
      %p232 = scmp.eq.s32.totalorder %s22, 0
      %p233 = por %p231, %p232
      %p234 = scmp.ne.s32.totalorder %s226, %s228
      %p235 = scmp.eq.s32.totalorder %s27, 3
      %p236 = por %p234, %p235
      %p237 = scmp.ne.s32.totalorder %s228, %s229
      %p238 = scmp.eq.s32.totalorder %s27, 0
      %p239 = por %p237, %p238
      %p240 = scmp.ne.s32.totalorder %s228, %s229
      %p241 = scmp.eq.s32.totalorder %s28, 3
      %p242 = por %p240, %p241
      %p244 = scmp.ne.s32.totalorder %s229, %s243
      %p245 = scmp.eq.s32.totalorder %s28, 0
      %p246 = por %p244, %p245
      %p247 = scmp.le.s32.totalorder 1, %s22
      %p248 = scmp.lt.s32.totalorder %s22, 5
      %p249 = pnand %p247, %p248
      %p250 = pneg %p249
      // Predicated region
      $region9: #{tpu_custom_call.1} parent=5 // pred_check
        _
      $region10: #{tpu_custom_call.1} parent=5 // pred_check_branch
        %252 = sbr.rel (%p249) target = $region12
      $region11: #{tpu_custom_call.1} parent=5 // pred_region
        %s253 = ssub.s32 %s22, 1
        // Predicated region
        $region13: #{tpu_custom_call.1} parent=11 // pred_check
          %p254 = pneg %p113
        $region14: #{tpu_custom_call.1} parent=11 // pred_check_branch
          %256 = sbr.rel (%p254) target = $region16
        $region15: #{tpu_custom_call.1} parent=11 // pred_region
          %s258 = ssub.s32 2048, 2048
          %259 = vsyncadd [#allocation12], %s258
          %s260 = sshll.u32 [#allocation13], 4
          %s261 = int_to_ptr.vmem [resolvable:$true] %s260
          %266 = dma.hbm_to_vmem [thread:$0]  %s2, 2048, %s261, [#allocation12], 128, 128, 8
        $region16: #{tpu_custom_call.1} parent=11 // pred_fallthru
          _
        // Predicated region
        $region17: #{tpu_custom_call.1} parent=11 // pred_check
          %p267 = pneg %p134
        $region18: #{tpu_custom_call.1} parent=11 // pred_check_branch
          %269 = sbr.rel (%p267) target = $region20
        $region19: #{tpu_custom_call.1} parent=11 // pred_region
          _
        $region20: #{tpu_custom_call.1} parent=11 // pred_fallthru
          _
        // Predicated region
        $region21: #{tpu_custom_call.1} parent=11 // pred_check
          %p270 = pneg %p155
        $region22: #{tpu_custom_call.1} parent=11 // pred_check_branch
          %272 = sbr.rel (%p270) target = $region24
        $region23: #{tpu_custom_call.1} parent=11 // pred_region
          _
        $region24: #{tpu_custom_call.1} parent=11 // pred_fallthru
          _
        // Predicated region
        $region25: #{tpu_custom_call.1} parent=11 // pred_check
          %p273 = pneg %p176
        $region26: #{tpu_custom_call.1} parent=11 // pred_check_branch
          %275 = sbr.rel (%p273) target = $region28
        $region27: #{tpu_custom_call.1} parent=11 // pred_region
          _
        $region28: #{tpu_custom_call.1} parent=11 // pred_fallthru
          _
        // Predicated region
        $region29: #{tpu_custom_call.1} parent=11 // pred_check
          %p276 = pneg %p197
        $region30: #{tpu_custom_call.1} parent=11 // pred_check_branch
          %278 = sbr.rel (%p276) target = $region32
        $region31: #{tpu_custom_call.1} parent=11 // pred_region
          %s280 = ssub.s32 2048, 2048
          %281 = vsyncadd [#allocation15], %s280
          %s282 = sshll.u32 [#allocation14], 4
          %s283 = int_to_ptr.vmem [resolvable:$true] %s282
          %288 = dma.hbm_to_vmem [thread:$0]  %s6, 2048, %s283, [#allocation15], 64, 64, 4
        $region32: #{tpu_custom_call.1} parent=11 // pred_fallthru
          _
        // Predicated region
        $region33: #{tpu_custom_call.1} parent=11 // pred_check
          %p289 = pneg %p218
        $region34: #{tpu_custom_call.1} parent=11 // pred_check_branch
          %291 = sbr.rel (%p289) target = $region36
        $region35: #{tpu_custom_call.1} parent=11 // pred_region
          _
        $region36: #{tpu_custom_call.1} parent=11 // pred_fallthru
          _
      $region12: #{tpu_custom_call.1} parent=5 // pred_fallthru
        _
      %p292 = scmp.lt.s32.totalorder %s22, 4
      // Predicated region
      $region37: #{tpu_custom_call.1} parent=5 // pred_check
        %p293 = pneg %p292
      $region38: #{tpu_custom_call.1} parent=5 // pred_check_branch
        %295 = sbr.rel (%p293) target = $region40
      $region39: #{tpu_custom_call.1} parent=5 // pred_region
        // Predicated region
        $region41: #{tpu_custom_call.1} parent=39 // pred_check
          %p296 = pneg %p58
        $region42: #{tpu_custom_call.1} parent=39 // pred_check_branch
          %298 = sbr.rel (%p296) target = $region44
        $region43: #{tpu_custom_call.1} parent=39 // pred_region
          %s299 = sand.u32 %s48, 1
          %s300 = scalar_lea.sflag [#allocation9], %s299
          %s301 = sand.u32 %s48, 1
          %s302 = smul.addr %s301, 32
          %s303 = scalar_lea.vmem [#allocation8], %s302
          %s304 = ssub.s32 1, %s29
          %s305 = smul.u32 %s30, %s304
          %s306 = smul.u32 4, %s305
          %s308 = ssub.s32 512, 512
          %309 = vsyncadd %s300, %s308
          %s310 = smul.addr %s306, 128
          %s311 = scalar_lea.hbm %s0, %s310
          %s312 = sshll.u32 %s303, 4
          %s313 = int_to_ptr.vmem [resolvable:$true] %s312
          %318 = dma.hbm_to_vmem [thread:$0]  %s311, 512, %s313, %s300, 128, 128, 8
        $region44: #{tpu_custom_call.1} parent=39 // pred_fallthru
          _
        // Predicated region
        $region45: #{tpu_custom_call.1} parent=39 // pred_check
          %p319 = pneg %p86
        $region46: #{tpu_custom_call.1} parent=39 // pred_check_branch
          %321 = sbr.rel (%p319) target = $region48
        $region47: #{tpu_custom_call.1} parent=39 // pred_region
          %s322 = sand.u32 %s22, 1
          %s323 = scalar_lea.sflag [#allocation12], %s322
          %s324 = sand.u32 %s76, 1
          %s325 = smul.addr %s324, 32
          %s326 = scalar_lea.vmem [#allocation11], %s325
          %s327 = smul.u32 %s30, %s29
          %s328 = smul.u32 4, %s327
          %s330 = ssub.s32 512, 512
          %331 = vsyncadd %s323, %s330
          %s332 = smul.addr %s328, 128
          %s333 = scalar_lea.hbm %s1, %s332
          %s334 = sshll.u32 %s326, 4
          %s335 = int_to_ptr.vmem [resolvable:$true] %s334
          %340 = dma.hbm_to_vmem [thread:$0]  %s333, 512, %s335, %s323, 128, 128, 8
        $region48: #{tpu_custom_call.1} parent=39 // pred_fallthru
          _
      $region40: #{tpu_custom_call.1} parent=5 // pred_fallthru
        _
      %p341 = scmp.le.s32.totalorder 1, %s22
      %p342 = scmp.lt.s32.totalorder %s22, 5
      %p343 = pnand %p341, %p342
      %p344 = pneg %p343
      // Predicated region
      $region49: #{tpu_custom_call.1} parent=5 // pred_check
        _
      $region50: #{tpu_custom_call.1} parent=5 // pred_check_branch
        %346 = sbr.rel (%p343) target = $region52
      $region51: #{tpu_custom_call.1} parent=5 // pred_region
        %s347 = ssub.s32 %s22, 1
        %s348 = sand.u32 %s51, 1
        %s349 = scalar_lea.sflag [#allocation9], %s348
        %s350 = sand.u32 %s51, 1
        %s351 = smul.addr %s350, 32
        %s352 = scalar_lea.vmem [#allocation8], %s351
        // Predicated region
        $region53: #{tpu_custom_call.1} parent=51 // pred_check
          %p353 = pneg %p64
        $region54: #{tpu_custom_call.1} parent=51 // pred_check_branch
          %355 = sbr.rel (%p353) target = $region56
        $region55: #{tpu_custom_call.1} parent=51 // pred_region
          %356 = dma.done %s349, 512
        $region56: #{tpu_custom_call.1} parent=51 // pred_fallthru
          _
        %s357 = sand.u32 %s27, 1
        %s358 = scalar_lea.sflag [#allocation12], %s357
        %s359 = sand.u32 %s79, 1
        %s360 = smul.addr %s359, 32
        %s361 = scalar_lea.vmem [#allocation11], %s360
        // Predicated region
        $region57: #{tpu_custom_call.1} parent=51 // pred_check
          %p362 = pneg %p92
        $region58: #{tpu_custom_call.1} parent=51 // pred_check_branch
          %364 = sbr.rel (%p362) target = $region60
        $region59: #{tpu_custom_call.1} parent=51 // pred_region
          %365 = dma.done %s358, 512
        $region60: #{tpu_custom_call.1} parent=51 // pred_fallthru
          _
        // Predicated region
        $region61: #{tpu_custom_call.1} parent=51 // pred_check
          %p366 = pneg %p113
        $region62: #{tpu_custom_call.1} parent=51 // pred_check_branch
          %368 = sbr.rel (%p366) target = $region64
        $region63: #{tpu_custom_call.1} parent=51 // pred_region
          %369 = dma.done [#allocation12], 2048
        $region64: #{tpu_custom_call.1} parent=51 // pred_fallthru
          _
        // Predicated region
        $region65: #{tpu_custom_call.1} parent=51 // pred_check
          %p370 = pneg %p197
        $region66: #{tpu_custom_call.1} parent=51 // pred_check_branch
          %372 = sbr.rel (%p370) target = $region68
        $region67: #{tpu_custom_call.1} parent=51 // pred_region
          %373 = dma.done [#allocation15], 2048
        $region68: #{tpu_custom_call.1} parent=51 // pred_fallthru
          _
        %s374 = sand.u32 %s51, 1
        %s375 = scalar_lea.sflag [#allocation9], %s374
        %s376 = sand.u32 %s51, 1
        %s377 = smul.addr %s376, 32
        %s378 = scalar_lea.vmem [#allocation8], %s377
        %p379 = pneg %p64
        %p380 = pneg %p61
        %s381 = sand.u32 %s27, 1
        %s382 = scalar_lea.sflag [#allocation12], %s381
        %s383 = sand.u32 %s79, 1
        %s384 = smul.addr %s383, 32
        %s385 = scalar_lea.vmem [#allocation11], %s384
        %p386 = pneg %p92
        %p387 = pneg %p89
        %p388 = pneg %p113
        %p389 = pneg %p110
        %p390 = pneg %p134
        %p391 = pneg %p131
        %p392 = pneg %p155
        %p393 = pneg %p152
        %p394 = pneg %p176
        %p395 = pneg %p173
        %p396 = pneg %p197
        %p397 = pneg %p194
        %p398 = pneg %p218
        %p399 = pneg %p215
        %p400 = pneg %p239
        %p401 = pneg %p236
        %s402 = ssub.s32 1, %s31
        %s403 = smul.u32 %s32, %s402
        %s404 = smul.u32 4, %s403
        %s405 = smul.u32 %s32, %s31
        %s406 = smul.u32 4, %s405
        %p408 = scmp.eq.s32.totalorder %s31, 0
        // Predicated region
        $region69: #{tpu_custom_call.1} parent=51 // pred_check
          %p409 = pneg %p408
        $region70: #{tpu_custom_call.1} parent=51 // pred_check_branch
          %411 = sbr.rel (%p409) target = $region72
        $region71: #{tpu_custom_call.1} parent=51 // pred_region
          %v412 = vld [vmem:[%s352] sm:$0xff]
          %v413 = vld [vmem:[%s352 + $0x8] sm:$0xff]
          %v414 = vld [vmem:[%s352 + $0x10] sm:$0xff]
          %v415 = vld [vmem:[%s352 + $0x18] sm:$0xff]
          %v416 = vpack.c.bf16 %v413, %v412
          %v417 = vpack.c.bf16 %v415, %v414
          %v418 = vld [vmem:[#allocation13] sm:$0xff]
          %v419 = vld [vmem:[#allocation13 + $0x8] sm:$0xff]
          %v420 = vld [vmem:[#allocation13 + $0x10] sm:$0xff]
          %v421 = vld [vmem:[#allocation13 + $0x18] sm:$0xff]
          %v422 = vld [vmem:[#allocation13 + $0x20] sm:$0xff]
          %v423 = vld [vmem:[#allocation13 + $0x28] sm:$0xff]
          %v424 = vld [vmem:[#allocation13 + $0x30] sm:$0xff]
          %v425 = vld [vmem:[#allocation13 + $0x38] sm:$0xff]
          %v426 = vld [vmem:[#allocation13 + $0x40] sm:$0xff]
          %v427 = vld [vmem:[#allocation13 + $0x48] sm:$0xff]
          %v428 = vld [vmem:[#allocation13 + $0x50] sm:$0xff]
          %v429 = vld [vmem:[#allocation13 + $0x58] sm:$0xff]
          %v430 = vld [vmem:[#allocation13 + $0x60] sm:$0xff]
          %v431 = vld [vmem:[#allocation13 + $0x68] sm:$0xff]
          %v432 = vld [vmem:[#allocation13 + $0x70] sm:$0xff]
          %v433 = vld [vmem:[#allocation13 + $0x78] sm:$0xff]
          %v434 = vld [vmem:[%s3] sm:$0x3]
          %v436 = vlaneseq
          %v437 = vshrl.u32 %v436, 7
          %v438 = vsub.s32 0, %v437
          %v439 = vrot.slane %v434, %v438
          %v440 = vlaneseq
          %v441 = vshrl.u32 %v440, 7
          %v442 = vsub.s32 1, %v441
          %v443 = vrot.slane %v434, %v442
          %v462 = vunpack.c.l.b16 %v418
          %v463 = vunpack.c.h.b16 %v418
          %v464 = vunpack.c.l.b16 %v419
          %v465 = vunpack.c.h.b16 %v419
          %v466 = vunpack.c.l.b16 %v420
          %v467 = vunpack.c.h.b16 %v420
          %v468 = vunpack.c.l.b16 %v421
          %v469 = vunpack.c.h.b16 %v421
          %v470 = vunpack.c.l.b16 %v422
          %v471 = vunpack.c.h.b16 %v422
          %v472 = vunpack.c.l.b16 %v423
          %v473 = vunpack.c.h.b16 %v423
          %v474 = vunpack.c.l.b16 %v424
          %v475 = vunpack.c.h.b16 %v424
          %v476 = vunpack.c.l.b16 %v425
          %v477 = vunpack.c.h.b16 %v425
          %v478 = vunpack.c.l.b16 %v426
          %v479 = vunpack.c.h.b16 %v426
          %v480 = vunpack.c.l.b16 %v427
          %v481 = vunpack.c.h.b16 %v427
          %v482 = vunpack.c.l.b16 %v428
          %v483 = vunpack.c.h.b16 %v428
          %v484 = vunpack.c.l.b16 %v429
          %v485 = vunpack.c.h.b16 %v429
          %v486 = vunpack.c.l.b16 %v430
          %v487 = vunpack.c.h.b16 %v430
          %v488 = vunpack.c.l.b16 %v431
          %v489 = vunpack.c.h.b16 %v431
          %v490 = vunpack.c.l.b16 %v432
          %v491 = vunpack.c.h.b16 %v432
          %v492 = vunpack.c.l.b16 %v433
          %v493 = vunpack.c.h.b16 %v433
          %v494 = vpack.c.b16 %v464, %v462
          %v495 = vpack.c.b16 %v465, %v463
          %v496 = vpack.c.b16 %v468, %v466
          %v497 = vpack.c.b16 %v469, %v467
          %v498 = vpack.c.b16 %v472, %v470
          %v499 = vpack.c.b16 %v473, %v471
          %v500 = vpack.c.b16 %v476, %v474
          %v501 = vpack.c.b16 %v477, %v475
          %v502 = vpack.c.b16 %v480, %v478
          %v503 = vpack.c.b16 %v481, %v479
          %v504 = vpack.c.b16 %v484, %v482
          %v505 = vpack.c.b16 %v485, %v483
          %v506 = vpack.c.b16 %v488, %v486
          %v507 = vpack.c.b16 %v489, %v487
          %v508 = vpack.c.b16 %v492, %v490
          %v509 = vpack.c.b16 %v493, %v491
          %526 = vmatprep.subr.bf16.mxu0 %v495
          %527 = vmatpush1.bf16.msra.mxu0 %v494
          %528 = vmatprep.subr.bf16.mxu0 %v497
          %529 = vmatpush1.bf16.msra.mxu0 %v496
          %530 = vmatprep.subr.bf16.mxu0 %v499
          %531 = vmatpush1.bf16.msra.mxu0 %v498
          %532 = vmatprep.subr.bf16.mxu0 %v501
          %533 = vmatpush1.bf16.msra.mxu0 %v500
          %534 = vmatprep.subr.bf16.mxu0 %v503
          %535 = vmatpush1.bf16.msra.mxu0 %v502
          %536 = vmatprep.subr.bf16.mxu0 %v505
          %537 = vmatpush1.bf16.msra.mxu0 %v504
          %538 = vmatprep.subr.bf16.mxu0 %v507
          %539 = vmatpush1.bf16.msra.mxu0 %v506
          %540 = vmatprep.subr.bf16.mxu0 %v509
          %541 = vmatpush1.bf16.msra.mxu0 %v508
          %542 = vmatprep.subr.bf16.mxu0 0
          %543 = vmatpush1.bf16.msra.mxu0 0
          %544 = vmatprep.subr.bf16.mxu0 0
          %545 = vmatpush1.bf16.msra.mxu0 0
          %546 = vmatprep.subr.bf16.mxu0 0
          %547 = vmatpush1.bf16.msra.mxu0 0
          %548 = vmatprep.subr.bf16.mxu0 0
          %549 = vmatpush1.bf16.msra.mxu0 0
          %550 = vmatprep.subr.bf16.mxu0 0
          %551 = vmatpush1.bf16.msra.mxu0 0
          %552 = vmatprep.subr.bf16.mxu0 0
          %553 = vmatpush1.bf16.msra.mxu0 0
          %554 = vmatprep.subr.bf16.mxu0 0
          %555 = vmatpush1.bf16.msra.mxu0 0
          %556 = vmatprep.subr.bf16.mxu0 0
          %557 = vmatpush1.bf16.msra.mxu0 0
          %558 = vmatprep.mubr.bf16.mxu0 0
          %559 = vmatmul.mubr.bf16.gmra.mrb[0].mxu0 %v416
          %v560 = vpop.f32.mrb[0].mxu0
          %v561 = vadd.f32 %v439, %v560
          %v562 = vpop.f32.mrb[0].mxu0
          %v563 = vadd.f32 %v443, %v562
          %v564 = vpop.f32.mrb[0].mxu0
          %v565 = vadd.f32 %v439, %v564
          %v566 = vpop.f32.mrb[0].mxu0
          %v567 = vadd.f32 %v443, %v566
          %568 = vmatprep.mubr.bf16.mxu0 0
          %569 = vmatmul.mubr.bf16.gmra.mrb[0].mxu0 %v417
          %v570 = vpop.f32.mrb[0].mxu0
          %v571 = vadd.f32 %v439, %v570
          %v572 = vpop.f32.mrb[0].mxu0
          %v573 = vadd.f32 %v443, %v572
          %v574 = vpop.f32.mrb[0].mxu0
          %v575 = vadd.f32 %v439, %v574
          %v576 = vpop.f32.mrb[0].mxu0
          %v577 = vadd.f32 %v443, %v576
          %578 = vdwg.mxu0
          %p579 = scmp.eq.s32.totalorder %s32, 0
          // Predicated region
          $region73: #{tpu_custom_call.1} parent=71 // pred_check
            %p580 = pneg %p579
          $region74: #{tpu_custom_call.1} parent=71 // pred_check_branch
            %582 = sbr.rel (%p580) target = $region76
          $region75: #{tpu_custom_call.1} parent=71 // pred_region
            %v583 = vlaneseq
            %vm584 = vcmp.ge.s32.totalorder %v583, 0
            %vm585 = vcmp.lt.s32.totalorder %v583, 256
            %vm586 = vmand %vm584, %vm585
            %587 = vst.msk [vmem:[#allocation2] sm:$0x3] %vm586, 0.0
            %588 = vst.msk [vmem:[#allocation3] sm:$0x3] %vm586, 0.0
          $region76: #{tpu_custom_call.1} parent=71 // pred_fallthru
            _
          %v589 = vld [vmem:[#allocation2] sm:$0x3]
          %v590 = vadd.f32 %v561, %v565
          %v591 = vadd.f32 %v590, %v571
          %v592 = vadd.f32 %v591, %v575
          %v593 = vrot.slane %v592, 4
          %v594 = vadd.f32 %v592, %v593
          %v595 = vrot.slane %v594, 2
          %v596 = vadd.f32 %v594, %v595
          %v597 = vrot.slane %v596, 1
          %v598 = vadd.f32 %v596, %v597
          %v599 = vadd.f32 %v563, %v567
          %v600 = vadd.f32 %v599, %v573
          %v601 = vadd.f32 %v600, %v577
          %v602 = vrot.slane %v601, 4
          %v603 = vadd.f32 %v601, %v602
          %v604 = vrot.slane %v603, 2
          %v605 = vadd.f32 %v603, %v604
          %v606 = vrot.slane %v605, 1
          %v607 = vadd.f32 %v605, %v606
          %v610 = vcombine.low %v598, %v607
          %v612 = vunpack.c.l.s4 1966171168
          %v613 = vunpack.c.0.s8 %v612
          %v614 = vlaneseq
          %v615 = vshrl.u32 %v614, 7
          %v616 = vsub.s32 %v613, %v615
          %v617 = vrot.slane %v610, %v616
          %v619 = vunpack.c.l.s4 1966171168
          %v620 = vunpack.c.0.s8 %v619
          %v621 = vlaneseq
          %v622 = vshrl.u32 %v621, 7
          %v623 = vsub.s32 %v620, %v622
          %v624 = vrot.slane %v617, %v623
          %v626 = vadd.f32 %v589, %v624
          %v627 = vlaneseq
          %vm628 = vcmp.ge.s32.totalorder %v627, 0
          %vm629 = vcmp.lt.s32.totalorder %v627, 256
          %vm630 = vmand %vm628, %vm629
          %631 = vst.msk [vmem:[#allocation2] sm:$0x3] %vm630, %v626
          %v632 = vld [vmem:[#allocation3] sm:$0x3]
          %v633 = vmul.f32 %v561, %v561
          %v634 = vmul.f32 %v563, %v563
          %v635 = vmul.f32 %v565, %v565
          %v636 = vmul.f32 %v567, %v567
          %v637 = vmul.f32 %v571, %v571
          %v638 = vmul.f32 %v573, %v573
          %v639 = vmul.f32 %v575, %v575
          %v640 = vmul.f32 %v577, %v577
          %v641 = vadd.f32 %v633, %v635
          %v642 = vadd.f32 %v641, %v637
          %v643 = vadd.f32 %v642, %v639
          %v644 = vrot.slane %v643, 4
          %v645 = vadd.f32 %v643, %v644
          %v646 = vrot.slane %v645, 2
          %v647 = vadd.f32 %v645, %v646
          %v648 = vrot.slane %v647, 1
          %v649 = vadd.f32 %v647, %v648
          %v650 = vadd.f32 %v634, %v636
          %v651 = vadd.f32 %v650, %v638
          %v652 = vadd.f32 %v651, %v640
          %v653 = vrot.slane %v652, 4
          %v654 = vadd.f32 %v652, %v653
          %v655 = vrot.slane %v654, 2
          %v656 = vadd.f32 %v654, %v655
          %v657 = vrot.slane %v656, 1
          %v658 = vadd.f32 %v656, %v657
          %v661 = vcombine.low %v649, %v658
          %v663 = vunpack.c.l.s4 1966171168
          %v664 = vunpack.c.0.s8 %v663
          %v665 = vlaneseq
          %v666 = vshrl.u32 %v665, 7
          %v667 = vsub.s32 %v664, %v666
          %v668 = vrot.slane %v661, %v667
          %v670 = vunpack.c.l.s4 1966171168
          %v671 = vunpack.c.0.s8 %v670
          %v672 = vlaneseq
          %v673 = vshrl.u32 %v672, 7
          %v674 = vsub.s32 %v671, %v673
          %v675 = vrot.slane %v668, %v674
          %v677 = vadd.f32 %v632, %v675
          %678 = vst.msk [vmem:[#allocation3] sm:$0x3] %vm630, %v677
          %v679 = vpack.c.bf16 %v565, %v561
          %v680 = vpack.c.bf16 %v567, %v563
          %v681 = vpack.c.bf16 %v575, %v571
          %v682 = vpack.c.bf16 %v577, %v573
          %s683 = smul.u32 %s32, 4
          %s684 = smul.addr %s683, 8
          %s685 = scalar_lea.vmem [#allocation7], %s684
          %686 = vst [vmem:[%s685] sm:$0xff] %v679
          %687 = vst [vmem:[%s685 + $0x8] sm:$0xff] %v680
          %688 = vst [vmem:[%s685 + $0x10] sm:$0xff] %v681
          %689 = vst [vmem:[%s685 + $0x18] sm:$0xff] %v682
        $region72: #{tpu_custom_call.1} parent=51 // pred_fallthru
          _
        %p690 = scmp.eq.s32.totalorder %s31, 1
        // Predicated region
        $region77: #{tpu_custom_call.1} parent=51 // pred_check
          %p691 = pneg %p690
        $region78: #{tpu_custom_call.1} parent=51 // pred_check_branch
          %693 = sbr.rel (%p691) target = $region80
        $region79: #{tpu_custom_call.1} parent=51 // pred_region
          %p694 = scmp.eq.s32.totalorder %s32, 0
          // Predicated region
          $region81: #{tpu_custom_call.1} parent=79 // pred_check
            %p695 = pneg %p694
          $region82: #{tpu_custom_call.1} parent=79 // pred_check_branch
            %697 = sbr.rel (%p695) target = $region84
          $region83: #{tpu_custom_call.1} parent=79 // pred_region
            %v698 = vld [vmem:[#allocation2] sm:$0x3]
            %v699 = vmul.f32 %v698, 0.015625
            %v700 = vld [vmem:[#allocation3] sm:$0x3]
            %v701 = vmul.f32 %v700, 0.015625
            %v702 = vmul.f32 %v699, %v699
            %v703 = vsub.f32 %v701, %v702
            %v704 = vld [vmem:[%s4] sm:$0x3]
            %v705 = vadd.f32 %v703, 1e-05
            %v706 = vrsqrt.pop %v705
            %v707 = vmul.f32 %v704, %v706
            %v708 = vlaneseq
            %vm709 = vcmp.ge.s32.totalorder %v708, 0
            %vm710 = vcmp.lt.s32.totalorder %v708, 256
            %vm711 = vmand %vm709, %vm710
            %712 = vst.msk [vmem:[#allocation4] sm:$0x3] %vm711, %v707
            %v713 = vld [vmem:[%s5] sm:$0x3]
            %v714 = vmul.f32 %v699, %v707
            %v715 = vsub.f32 %v713, %v714
            %716 = vst.msk [vmem:[#allocation5] sm:$0x3] %vm711, %v715
            %vm717 = vcmask 0
            %718 = vst.msk [vmem:[#allocation6] sm:$0x1] %vm717, 0.0
          $region84: #{tpu_custom_call.1} parent=79 // pred_fallthru
            _
          %s719 = smul.u32 %s32, 4
          %s720 = smul.addr %s719, 8
          %s721 = scalar_lea.vmem [#allocation7], %s720
          %v722 = vld [vmem:[%s721] sm:$0xff]
          %v723 = vld [vmem:[%s721 + $0x8] sm:$0xff]
          %v724 = vld [vmem:[%s721 + $0x10] sm:$0xff]
          %v725 = vld [vmem:[%s721 + $0x18] sm:$0xff]
          %v726 = vunpack.c.l.bf16 %v722
          %v727 = vunpack.c.l.bf16 %v723
          %v728 = vunpack.c.h.bf16 %v722
          %v729 = vunpack.c.h.bf16 %v723
          %v730 = vunpack.c.l.bf16 %v724
          %v731 = vunpack.c.l.bf16 %v725
          %v732 = vunpack.c.h.bf16 %v724
          %v733 = vunpack.c.h.bf16 %v725
          %v734 = vld [vmem:[#allocation4] sm:$0x3]
          %v736 = vlaneseq
          %v737 = vshrl.u32 %v736, 7
          %v738 = vsub.s32 0, %v737
          %v739 = vrot.slane %v734, %v738
          %v740 = vlaneseq
          %v741 = vshrl.u32 %v740, 7
          %v742 = vsub.s32 1, %v741
          %v743 = vrot.slane %v734, %v742
          %v746 = vmul.f32 %v726, %v739
          %v747 = vmul.f32 %v727, %v743
          %v748 = vmul.f32 %v728, %v739
          %v749 = vmul.f32 %v729, %v743
          %v750 = vmul.f32 %v730, %v739
          %v751 = vmul.f32 %v731, %v743
          %v752 = vmul.f32 %v732, %v739
          %v753 = vmul.f32 %v733, %v743
          %v754 = vld [vmem:[#allocation5] sm:$0x3]
          %v756 = vlaneseq
          %v757 = vshrl.u32 %v756, 7
          %v758 = vsub.s32 0, %v757
          %v759 = vrot.slane %v754, %v758
          %v760 = vlaneseq
          %v761 = vshrl.u32 %v760, 7
          %v762 = vsub.s32 1, %v761
          %v763 = vrot.slane %v754, %v762
          %v766 = vadd.f32 %v746, %v759
          %v767 = vadd.f32 %v747, %v763
          %v768 = vadd.f32 %v748, %v759
          %v769 = vadd.f32 %v749, %v763
          %v770 = vadd.f32 %v750, %v759
          %v771 = vadd.f32 %v751, %v763
          %v772 = vadd.f32 %v752, %v759
          %v773 = vadd.f32 %v753, %v763
          %v774 = vmax.f32 %v766, 0.0
          %v775 = vmax.f32 %v767, 0.0
          %v776 = vmax.f32 %v768, 0.0
          %v777 = vmax.f32 %v769, 0.0
          %v778 = vmax.f32 %v770, 0.0
          %v779 = vmax.f32 %v771, 0.0
          %v780 = vmax.f32 %v772, 0.0
          %v781 = vmax.f32 %v773, 0.0
          %v782 = vpack.c.bf16 %v776, %v774
          %v783 = vpack.c.bf16 %v777, %v775
          %v784 = vpack.c.bf16 %v780, %v778
          %v785 = vpack.c.bf16 %v781, %v779
          %v786 = vld [vmem:[#allocation14] sm:$0xf]
          %v787 = vld [vmem:[#allocation14 + $0x4] sm:$0xf]
          %v788 = vld [vmem:[#allocation14 + $0x8] sm:$0xf]
          %v789 = vld [vmem:[#allocation14 + $0xc] sm:$0xf]
          %v790 = vld [vmem:[#allocation14 + $0x10] sm:$0xf]
          %v791 = vld [vmem:[#allocation14 + $0x14] sm:$0xf]
          %v792 = vld [vmem:[#allocation14 + $0x18] sm:$0xf]
          %v793 = vld [vmem:[#allocation14 + $0x1c] sm:$0xf]
          %v794 = vld [vmem:[#allocation14 + $0x20] sm:$0xf]
          %v795 = vld [vmem:[#allocation14 + $0x24] sm:$0xf]
          %v796 = vld [vmem:[#allocation14 + $0x28] sm:$0xf]
          %v797 = vld [vmem:[#allocation14 + $0x2c] sm:$0xf]
          %v798 = vld [vmem:[#allocation14 + $0x30] sm:$0xf]
          %v799 = vld [vmem:[#allocation14 + $0x34] sm:$0xf]
          %v800 = vld [vmem:[#allocation14 + $0x38] sm:$0xf]
          %v801 = vld [vmem:[#allocation14 + $0x3c] sm:$0xf]
          %v802 = vld [vmem:[#allocation14 + $0x40] sm:$0xf]
          %v803 = vld [vmem:[#allocation14 + $0x44] sm:$0xf]
          %v804 = vld [vmem:[#allocation14 + $0x48] sm:$0xf]
          %v805 = vld [vmem:[#allocation14 + $0x4c] sm:$0xf]
          %v806 = vld [vmem:[#allocation14 + $0x50] sm:$0xf]
          %v807 = vld [vmem:[#allocation14 + $0x54] sm:$0xf]
          %v808 = vld [vmem:[#allocation14 + $0x58] sm:$0xf]
          %v809 = vld [vmem:[#allocation14 + $0x5c] sm:$0xf]
          %v810 = vld [vmem:[#allocation14 + $0x60] sm:$0xf]
          %v811 = vld [vmem:[#allocation14 + $0x64] sm:$0xf]
          %v812 = vld [vmem:[#allocation14 + $0x68] sm:$0xf]
          %v813 = vld [vmem:[#allocation14 + $0x6c] sm:$0xf]
          %v814 = vld [vmem:[#allocation14 + $0x70] sm:$0xf]
          %v815 = vld [vmem:[#allocation14 + $0x74] sm:$0xf]
          %v816 = vld [vmem:[#allocation14 + $0x78] sm:$0xf]
          %v817 = vld [vmem:[#allocation14 + $0x7c] sm:$0xf]
          %v818 = vld [vmem:[%s7] sm:$0x1]
          %v820 = vlaneseq
          %v821 = vshrl.u32 %v820, 7
          %v822 = vsub.s32 0, %v821
          %v823 = vrot.slane %v818, %v822
          %v857 = vunpack.c.l.b16 %v786
          %v858 = vunpack.c.l.b16 %v787
          %v859 = vunpack.c.l.b16 %v788
          %v860 = vunpack.c.l.b16 %v789
          %v861 = vunpack.c.l.b16 %v790
          %v862 = vunpack.c.l.b16 %v791
          %v863 = vunpack.c.l.b16 %v792
          %v864 = vunpack.c.l.b16 %v793
          %v865 = vunpack.c.l.b16 %v794
          %v866 = vunpack.c.l.b16 %v795
          %v867 = vunpack.c.l.b16 %v796
          %v868 = vunpack.c.l.b16 %v797
          %v869 = vunpack.c.l.b16 %v798
          %v870 = vunpack.c.l.b16 %v799
          %v871 = vunpack.c.l.b16 %v800
          %v872 = vunpack.c.l.b16 %v801
          %v873 = vunpack.c.l.b16 %v802
          %v874 = vunpack.c.l.b16 %v803
          %v875 = vunpack.c.l.b16 %v804
          %v876 = vunpack.c.l.b16 %v805
          %v877 = vunpack.c.l.b16 %v806
          %v878 = vunpack.c.l.b16 %v807
          %v879 = vunpack.c.l.b16 %v808
          %v880 = vunpack.c.l.b16 %v809
          %v881 = vunpack.c.l.b16 %v810
          %v882 = vunpack.c.l.b16 %v811
          %v883 = vunpack.c.l.b16 %v812
          %v884 = vunpack.c.l.b16 %v813
          %v885 = vunpack.c.l.b16 %v814
          %v886 = vunpack.c.l.b16 %v815
          %v887 = vunpack.c.l.b16 %v816
          %v888 = vunpack.c.l.b16 %v817
          %v889 = vpack.c.b16 %v858, %v857
          %v890 = vpack.c.b16 %v860, %v859
          %v891 = vpack.c.b16 %v862, %v861
          %v892 = vpack.c.b16 %v864, %v863
          %v893 = vpack.c.b16 %v866, %v865
          %v894 = vpack.c.b16 %v868, %v867
          %v895 = vpack.c.b16 %v870, %v869
          %v896 = vpack.c.b16 %v872, %v871
          %v897 = vpack.c.b16 %v874, %v873
          %v898 = vpack.c.b16 %v876, %v875
          %v899 = vpack.c.b16 %v878, %v877
          %v900 = vpack.c.b16 %v880, %v879
          %v901 = vpack.c.b16 %v882, %v881
          %v902 = vpack.c.b16 %v884, %v883
          %v903 = vpack.c.b16 %v886, %v885
          %v904 = vpack.c.b16 %v888, %v887
          %921 = vmatprep.subr.bf16.mxu0 0
          %922 = vmatpush1.bf16.msra.mxu0 %v889
          %923 = vmatprep.subr.bf16.mxu0 0
          %924 = vmatpush1.bf16.msra.mxu0 %v890
          %925 = vmatprep.subr.bf16.mxu0 0
          %926 = vmatpush1.bf16.msra.mxu0 %v891
          %927 = vmatprep.subr.bf16.mxu0 0
          %928 = vmatpush1.bf16.msra.mxu0 %v892
          %929 = vmatprep.subr.bf16.mxu0 0
          %930 = vmatpush1.bf16.msra.mxu0 %v893
          %931 = vmatprep.subr.bf16.mxu0 0
          %932 = vmatpush1.bf16.msra.mxu0 %v894
          %933 = vmatprep.subr.bf16.mxu0 0
          %934 = vmatpush1.bf16.msra.mxu0 %v895
          %935 = vmatprep.subr.bf16.mxu0 0
          %936 = vmatpush1.bf16.msra.mxu0 %v896
          %937 = vmatprep.subr.bf16.mxu0 0
          %938 = vmatpush1.bf16.msra.mxu0 %v897
          %939 = vmatprep.subr.bf16.mxu0 0
          %940 = vmatpush1.bf16.msra.mxu0 %v898
          %941 = vmatprep.subr.bf16.mxu0 0
          %942 = vmatpush1.bf16.msra.mxu0 %v899
          %943 = vmatprep.subr.bf16.mxu0 0
          %944 = vmatpush1.bf16.msra.mxu0 %v900
          %945 = vmatprep.subr.bf16.mxu0 0
          %946 = vmatpush1.bf16.msra.mxu0 %v901
          %947 = vmatprep.subr.bf16.mxu0 0
          %948 = vmatpush1.bf16.msra.mxu0 %v902
          %949 = vmatprep.subr.bf16.mxu0 0
          %950 = vmatpush1.bf16.msra.mxu0 %v903
          %951 = vmatprep.subr.bf16.mxu0 0
          %952 = vmatpush1.bf16.msra.mxu0 %v904
          %953 = vmatprep.mubr.bf16.mxu0 %v783
          %954 = vmatmul.mubr.bf16.gmra.mrb[0].mxu0 %v782
          %v955 = vpop.f32.mrb[0].mxu0
          %v956 = vadd.f32 %v823, %v955
          %v957 = vpop.f32.mrb[0].mxu0
          %v958 = vpop.f32.mrb[0].mxu0
          %v959 = vadd.f32 %v823, %v958
          %v960 = vpop.f32.mrb[0].mxu0
          %961 = vmatprep.mubr.bf16.mxu0 %v785
          %962 = vmatmul.mubr.bf16.gmra.mrb[0].mxu0 %v784
          %v963 = vpop.f32.mrb[0].mxu0
          %v964 = vadd.f32 %v823, %v963
          %v965 = vpop.f32.mrb[0].mxu0
          %v966 = vpop.f32.mrb[0].mxu0
          %v967 = vadd.f32 %v823, %v966
          %v968 = vpop.f32.mrb[0].mxu0
          %969 = vdwg.mxu0
          %v970 = vld [vmem:[%s361] sm:$0xff]
          %v971 = vld [vmem:[%s361 + $0x8] sm:$0xff]
          %v972 = vld [vmem:[%s361 + $0x10] sm:$0xff]
          %v973 = vld [vmem:[%s361 + $0x18] sm:$0xff]
          %v974 = vmul.f32 %v956, %v970
          %v975 = vmul.f32 %v959, %v971
          %v976 = vmul.f32 %v964, %v972
          %v977 = vmul.f32 %v967, %v973
          %978 = vadd.xlane.f32.xlu0 %v974
          %v979 = vpop.xlane.xlu0 %978
          %980 = vadd.xlane.f32.xlu0 %v975
          %v981 = vpop.xlane.xlu0 %980
          %982 = vadd.xlane.f32.xlu0 %v976
          %v983 = vpop.xlane.xlu0 %982
          %984 = vadd.xlane.f32.xlu0 %v977
          %v985 = vpop.xlane.xlu0 %984
          %v986 = vmul.f32 %v956, %v956
          %v987 = vmul.f32 %v959, %v959
          %v988 = vmul.f32 %v964, %v964
          %v989 = vmul.f32 %v967, %v967
          %990 = vadd.xlane.f32.xlu0 %v986
          %v991 = vpop.xlane.xlu0 %990
          %992 = vadd.xlane.f32.xlu0 %v987
          %v993 = vpop.xlane.xlu0 %992
          %994 = vadd.xlane.f32.xlu0 %v988
          %v995 = vpop.xlane.xlu0 %994
          %996 = vadd.xlane.f32.xlu0 %v989
          %v997 = vpop.xlane.xlu0 %996
          %v998 = vmul.f32 %v970, %v970
          %v999 = vmul.f32 %v971, %v971
          %v1000 = vmul.f32 %v972, %v972
          %v1001 = vmul.f32 %v973, %v973
          %1002 = vadd.xlane.f32.xlu0 %v998
          %v1003 = vpop.xlane.xlu0 %1002
          %1004 = vadd.xlane.f32.xlu0 %v999
          %v1005 = vpop.xlane.xlu0 %1004
          %1006 = vadd.xlane.f32.xlu0 %v1000
          %v1007 = vpop.xlane.xlu0 %1006
          %1008 = vadd.xlane.f32.xlu0 %v1001
          %v1009 = vpop.xlane.xlu0 %1008
          %v1010 = vmax.f32 %v991, 1e-24
          %v1011 = vmax.f32 %v993, 1e-24
          %v1012 = vmax.f32 %v995, 1e-24
          %v1013 = vmax.f32 %v997, 1e-24
          %v1014 = vrsqrt.pop %v1010
          %v1015 = vrsqrt.pop %v1011
          %v1016 = vrsqrt.pop %v1012
          %v1017 = vrsqrt.pop %v1013
          %v1018 = vmul.f32 %v979, %v1014
          %v1019 = vmul.f32 %v981, %v1015
          %v1020 = vmul.f32 %v983, %v1016
          %v1021 = vmul.f32 %v985, %v1017
          %v1022 = vmax.f32 %v1003, 1e-24
          %v1023 = vmax.f32 %v1005, 1e-24
          %v1024 = vmax.f32 %v1007, 1e-24
          %v1025 = vmax.f32 %v1009, 1e-24
          %v1026 = vrsqrt.pop %v1022
          %v1027 = vrsqrt.pop %v1023
          %v1028 = vrsqrt.pop %v1024
          %v1029 = vrsqrt.pop %v1025
          %v1030 = vmul.f32 %v1018, %v1026
          %v1031 = vmul.f32 %v1019, %v1027
          %v1032 = vmul.f32 %v1020, %v1028
          %v1033 = vmul.f32 %v1021, %v1029
          %v1034 = vld [vmem:[#allocation6] sm:$0x1]
          %vm1035 = vcmask 7168
          %v1036 = vsel %vm1035, %v1030, 0.0
          %v1037 = vsel %vm1035, %v1031, 0.0
          %v1038 = vadd.f32 %v1036, %v1037
          %v1039 = vsel %vm1035, %v1032, 0.0
          %v1040 = vadd.f32 %v1038, %v1039
          %v1041 = vsel %vm1035, %v1033, 0.0
          %v1042 = vadd.f32 %v1040, %v1041
          %1043 = vadd.xlane.f32.xlu0 %v1042
          %v1044 = vpop.xlane.xlu0 %1043
          %v1045 = vrot.slane %v1044, 4
          %v1046 = vadd.f32 %v1044, %v1045
          %v1047 = vrot.slane %v1046, 2
          %v1048 = vadd.f32 %v1046, %v1047
          %v1049 = vrot.slane %v1048, 1
          %v1050 = vadd.f32 %v1048, %v1049
          %s1051 = vtos %v1050
          %v1052 = vstv %s1051
          %v1053 = vadd.f32 %v1034, %v1052
          %vm1054 = vcmask 0
          %1055 = vst.msk [vmem:[#allocation6] sm:$0x1] %vm1054, %v1053
          %p1056 = scmp.eq.s32.totalorder %s32, 1
          // Predicated region
          $region85: #{tpu_custom_call.1} parent=79 // pred_check
            %p1057 = pneg %p1056
          $region86: #{tpu_custom_call.1} parent=79 // pred_check_branch
            %1059 = sbr.rel (%p1057) target = $region88
          $region87: #{tpu_custom_call.1} parent=79 // pred_region
            %v1060 = vld [vmem:[#allocation6] sm:$0x1]
            %v1061 = vmul.f32 %v1060, 0.015625
            %v1062 = vsub.f32 1.0, %v1061
            %v1063 = vmul.f32 %v1062, 2.0
            %1064 = vst.msk [vmem:[#allocation16] sm:$0x1] %vm1054, %v1063
          $region88: #{tpu_custom_call.1} parent=79 // pred_fallthru
            _
        $region80: #{tpu_custom_call.1} parent=51 // pred_fallthru
          _
        // Predicated region
        $region89: #{tpu_custom_call.1} parent=51 // pred_check
          %p1065 = pneg %p236
        $region90: #{tpu_custom_call.1} parent=51 // pred_check_branch
          %1067 = sbr.rel (%p1065) target = $region92
        $region91: #{tpu_custom_call.1} parent=51 // pred_region
          %s1069 = ssub.s32 16, 16
          %1070 = vsyncadd [#allocation10], %s1069
          %s1072 = sshll.u32 [#allocation16], 4
          %s1073 = int_to_ptr.vmem [resolvable:$true] %s1072
          %1075 = dma.vmem_to_hbm [thread:$0]  %s1073, 16, %s8, [#allocation10]
        $region92: #{tpu_custom_call.1} parent=51 // pred_fallthru
          _
        // Predicated region
        $region93: #{tpu_custom_call.1} parent=51 // pred_check
          %p1076 = pneg %p236
        $region94: #{tpu_custom_call.1} parent=51 // pred_check_branch
          %1078 = sbr.rel (%p1076) target = $region96
        $region95: #{tpu_custom_call.1} parent=51 // pred_region
          %1079 = dma.done [#allocation10], 16
        $region96: #{tpu_custom_call.1} parent=51 // pred_fallthru
          _
      $region52: #{tpu_custom_call.1} parent=5 // pred_fallthru
        _
      %p1080 = scmp.le.s32.totalorder 2, %s22
      // Predicated region
      $region97: #{tpu_custom_call.1} parent=5 // pred_check
        %p1081 = pneg %p1080
      $region98: #{tpu_custom_call.1} parent=5 // pred_check_branch
        %1083 = sbr.rel (%p1081) target = $region100
      $region99: #{tpu_custom_call.1} parent=5 // pred_region
        %s1084 = ssub.s32 %s22, 2
      $region100: #{tpu_custom_call.1} parent=5 // pred_fallthru
        _
    $region6: #{tpu_custom_call.1} parent=1 // loop_footer
      %s26 = sadd.s32 1, %s22
    $region7: #{tpu_custom_call.1} parent=1 // loop_footer_branch
      %21 = sbr.rel target = $region3
    $region8: #{tpu_custom_call.1} parent=1 // loop_exit
      _
    %1085 = vsyncpa [#allocation9], 1
    %s1086 = scalar_lea.sflag [#allocation9], 1
    %1087 = vsyncpa %s1086, 1
    %1088 = vsyncpa [#allocation12], 1
    %s1089 = scalar_lea.sflag [#allocation12], 1
    %1090 = vsyncpa %s1089, 1
    %1091 = vsyncpa [#allocation15], 1
    %1092 = vsyncpa [#allocation10], 1
    %s1093 = scalar_lea.sflag [#allocation10], 1
    %1094 = vsyncpa %s1093, 1

</llo_original>
